<compile_context>
chip_gen: v5e
topology: v5e:2x2
jax: 0.10.0
libtpu: 0.0.40
codegen_flags: <defaults>
</compile_context>

<pallas_src>
import functools

import jax
import jax.numpy as jnp
from jax.experimental import pallas as pl
from jax.experimental.pallas import tpu as pltpu


def _encoder_kernel(
    x_ref, w1_ref, b1_ref, w2_ref, b2_ref,          # inputs
    hd_ref, h1_ref,                                  # outputs (lane-dense slabs)
    xflat_ref, col1_ref, h1dense_ref, h1flat_ref, col2_ref, hddense_ref,  # scratch
    *, H, W, Cin, Cout, KH, KW, pad,
):
    """Fused Glu2d(conv+GLU) -> Conv2d forward for one batch element.

    Ref shapes (one grid step == one batch element):
      x_ref      : (Cin, H, W)               unpadded NCHW slice
      w1_ref     : (2*Cout, KH*KW*Cin)       conv1 weight, K ordered (kh, kw, cin)
      b1_ref     : (2*Cout, 1)
      w2_ref     : (Cout, KH*KW*Cout)        conv2 weight
      b2_ref     : (Cout, 1)
      hd_ref     : (Cout, H2*W2)             conv2 output (stride-1 dense), lane-dense
      h1_ref     : (Cout, H1*W1)             GLU output, lane-dense
      xflat_ref  : (Cin, Hp1*Wp1 + Wp1)      flat zero-padded input
      col1_ref   : (KH*KW*Cin, H1*Wp1)       im2col for conv1
      h1dense_ref: (Cout, H1*Wp1)            conv1/GLU result incl. junk columns
      h1flat_ref : (Cout, Hp2*Wp2 + Wp2)     flat zero-padded h1 (conv2 input)
      col2_ref   : (KH*KW*Cout, H2*Wp2)      im2col for conv2
      hddense_ref: (Cout, H2*Wp2)            conv2 result incl. junk columns
    """
    Hp1, Wp1 = H + 2 * pad, W + 2 * pad
    H1, W1 = Hp1 - KH + 1, Wp1 - KW + 1
    Hp2, Wp2 = H1 + 2 * pad, W1 + 2 * pad
    H2, W2 = Hp2 - KH + 1, Wp2 - KW + 1

    # ---------------- conv1 + GLU (stride 1) ----------------
    # In-kernel zero padding: scatter input rows into a flat padded scratch.
    xflat_ref[...] = jnp.zeros_like(xflat_ref)
    xv = x_ref[...]                                        # (Cin, H, W)
    for h in range(H):
        row = jax.lax.slice(xv, (0, h, 0), (Cin, h + 1, W)).reshape(Cin, W)
        off = (h + pad) * Wp1 + pad
        xflat_ref[:, off:off + W] = row

    # im2col via contiguous lane windows: flat position h*Wp1 + w of the tap
    # (kh, kw) window holds x_pad[h+kh, w+kw] (valid for w < W1; rest is junk).
    for kh in range(KH):
        for kw in range(KW):
            t = kh * KW + kw
            start = kh * Wp1 + kw
            col1_ref[t * Cin:(t + 1) * Cin, :] = xflat_ref[:, start:start + H1 * Wp1]

    acc1 = jnp.dot(w1_ref[...], col1_ref[...], preferred_element_type=jnp.float32)
    acc1 = acc1 + b1_ref[...]                              # (2*Cout, H1*Wp1)
    h1dense_ref[...] = acc1[:Cout] * jax.nn.sigmoid(acc1[Cout:])   # channel GLU

    # ------ repack h1: lane-dense HBM output + flat padded conv2 input ------
    h1flat_ref[...] = jnp.zeros_like(h1flat_ref)
    for h in range(H1):
        row = h1dense_ref[:, h * Wp1:h * Wp1 + W1]         # (Cout, W1) valid columns
        h1_ref[:, h * W1:(h + 1) * W1] = row.astype(h1_ref.dtype)
        off = (h + pad) * Wp2 + pad
        h1flat_ref[:, off:off + W1] = row

    # ---------------- conv2 (stride-1 dense) ----------------
    for kh in range(KH):
        for kw in range(KW):
            t = kh * KW + kw
            start = kh * Wp2 + kw
            col2_ref[t * Cout:(t + 1) * Cout, :] = h1flat_ref[:, start:start + H2 * Wp2]

    acc2 = jnp.dot(w2_ref[...], col2_ref[...], preferred_element_type=jnp.float32)
    hddense_ref[...] = acc2 + b2_ref[...]                  # (Cout, H2*Wp2)
    # TODO(synk): dropout (drop > 0) is not implemented; drop=0.0 is the identity.

    for h in range(H2):
        hd_ref[:, h * W2:(h + 1) * W2] = (
            hddense_ref[:, h * Wp2:h * Wp2 + W2].astype(hd_ref.dtype))


def gcunet2_encoder_forward(x, w1, b1, w2, b2, *, KH, KW, padding):
    """Fused forward. Returns (hd_dense, h1) in NCHW; hd_dense is the stride-1 conv2 output."""
    N, Cin, H, W = x.shape
    Cout = w2.shape[0]
    pad = padding
    taps = KH * KW
    Hp1, Wp1 = H + 2 * pad, W + 2 * pad
    H1, W1 = Hp1 - KH + 1, Wp1 - KW + 1
    Hp2, Wp2 = H1 + 2 * pad, W1 + 2 * pad
    H2, W2 = Hp2 - KH + 1, Wp2 - KW + 1

    kernel = functools.partial(
        _encoder_kernel, H=H, W=W, Cin=Cin, Cout=Cout, KH=KH, KW=KW, pad=pad)

    flops = 2 * N * taps * (Cin * 2 * Cout * H1 * Wp1 + Cout * Cout * H2 * Wp2)
    bytes_accessed = 4 * (x.size + w1.size + b1.size + w2.size + b2.size
                          + N * Cout * (H1 * W1 + H2 * W2))
    transcendentals = N * Cout * H1 * Wp1

    hd_flat, h1_flat = pl.pallas_call(
        kernel,
        out_shape=(
            jax.ShapeDtypeStruct((N, Cout, H2 * W2), x.dtype),
            jax.ShapeDtypeStruct((N, Cout, H1 * W1), x.dtype),
        ),
        grid_spec=pltpu.PrefetchScalarGridSpec(
            num_scalar_prefetch=0,
            grid=(N,),
            in_specs=[
                pl.BlockSpec((None, Cin, H, W), lambda n: (n, 0, 0, 0)),
                pl.BlockSpec((2 * Cout, taps * Cin), lambda n: (0, 0)),
                pl.BlockSpec((2 * Cout, 1), lambda n: (0, 0)),
                pl.BlockSpec((Cout, taps * Cout), lambda n: (0, 0)),
                pl.BlockSpec((Cout, 1), lambda n: (0, 0)),
            ],
            out_specs=[
                pl.BlockSpec((None, Cout, H2 * W2), lambda n: (n, 0, 0)),
                pl.BlockSpec((None, Cout, H1 * W1), lambda n: (n, 0, 0)),
            ],
            scratch_shapes=[
                pltpu.VMEM((Cin, Hp1 * Wp1 + Wp1), jnp.float32),
                pltpu.VMEM((taps * Cin, H1 * Wp1), jnp.float32),
                pltpu.VMEM((Cout, H1 * Wp1), jnp.float32),
                pltpu.VMEM((Cout, Hp2 * Wp2 + Wp2), jnp.float32),
                pltpu.VMEM((taps * Cout, H2 * Wp2), jnp.float32),
                pltpu.VMEM((Cout, H2 * Wp2), jnp.float32),
            ],
        ),
        compiler_params=pltpu.CompilerParams(
            dimension_semantics=("parallel",),   # batch blocks are independent
            vmem_limit_bytes=32 * 1024 * 1024,
        ),
        cost_estimate=pl.CostEstimate(
            flops=flops, transcendentals=transcendentals, bytes_accessed=bytes_accessed),
    )(x, w1, b1, w2, b2)

    # Free (contiguous, row-major) reshape from the lane-dense slabs back to NCHW 4-D.
    hd = hd_flat.reshape(N, Cout, H2, W2)
    h1 = h1_flat.reshape(N, Cout, H1, W1)
    return hd, h1


class GCUNet2EncoderPallas:
    """JAX/Pallas port of GCUNet2Encoder (groups=1, dilation=1, zero padding).

    Conv weights are stored as (C_out_total, KH*KW*C_in) with the contraction axis
    ordered (kh, kw, c_in); a torch OIHW weight maps to this layout via
    w.transpose(0, 2, 3, 1).reshape(O, KH*KW*I).
    """

    def __init__(self, in_channels, out_channels, kernel_size, stride=1, padding=0,
                 bias=True, key=jax.random.PRNGKey(0)):
        if isinstance(kernel_size, int):
            kernel_size = (kernel_size, kernel_size)
        if isinstance(stride, int):
            stride = (stride, stride)
        self.KH, self.KW = kernel_size
        self.stride = stride
        self.padding = padding
        self.Cin = in_channels
        self.Cout = out_channels

        k1, k2, k3, k4 = jax.random.split(key, 4)
        taps = self.KH * self.KW
        # glu2d_1: conv producing 2*Cout channels, stride (1, 1)
        self.w1 = jax.random.normal(
            k1, (2 * out_channels, taps * in_channels), jnp.float32) * 0.1
        self.b1 = (jax.random.normal(k2, (2 * out_channels, 1), jnp.float32) * 0.1
                   if bias else jnp.zeros((2 * out_channels, 1), jnp.float32))
        # conv2d_2: Cout -> Cout with the given stride
        self.w2 = jax.random.normal(
            k3, (out_channels, taps * out_channels), jnp.float32) * 0.1
        self.b2 = (jax.random.normal(k4, (out_channels, 1), jnp.float32) * 0.1
                   if bias else jnp.zeros((out_channels, 1), jnp.float32))

    def __call__(self, x_nchw, drop=0.0):
        # TODO(synk): dropout (drop > 0) is not implemented; drop=0.0 is the identity.
        hd, h1 = gcunet2_encoder_forward(
            x_nchw, self.w1, self.b1, self.w2, self.b2,
            KH=self.KH, KW=self.KW, padding=self.padding)
        sh, sw = self.stride
        if sh != 1 or sw != 1:
            # TODO(synk): stride > 1 is computed dense in-kernel and subsampled here;
            # correct, but wastes ~stride^2 of the conv2 FLOPs.
            hd = hd[:, :, ::sh, ::sw]
        return hd, h1


def _reference_forward(x, enc):
    """Pure-XLA reference (lax.conv) used only for a correctness check."""
    KH, KW, Cin, Cout = enc.KH, enc.KW, enc.Cin, enc.Cout
    p = enc.padding
    dn = ("NCHW", "OIHW", "NCHW")
    w1 = enc.w1.reshape(2 * Cout, KH, KW, Cin).transpose(0, 3, 1, 2)
    w2 = enc.w2.reshape(Cout, KH, KW, Cout).transpose(0, 3, 1, 2)
    y1 = jax.lax.conv_general_dilated(
        x, w1, (1, 1), [(p, p), (p, p)], dimension_numbers=dn,
        precision=jax.lax.Precision.HIGHEST)
    y1 = y1 + enc.b1.reshape(1, -1, 1, 1)
    a, g = jnp.split(y1, 2, axis=1)
    h1 = a * jax.nn.sigmoid(g)
    y2 = jax.lax.conv_general_dilated(
        h1, w2, enc.stride, [(p, p), (p, p)], dimension_numbers=dn,
        precision=jax.lax.Precision.HIGHEST)
    hd = y2 + enc.b2.reshape(1, -1, 1, 1)
    return hd, h1


if __name__ == "__main__":
    key = jax.random.PRNGKey(0)
    k_x, k_p = jax.random.split(key)

    N, Cin, H, W = 2, 4, 16, 16
    Cout, ksize, stride, padding = 8, 3, 1, 1

    x = jax.random.normal(k_x, (N, Cin, H, W), jnp.float32)
    enc = GCUNet2EncoderPallas(Cin, Cout, ksize, stride=stride, padding=padding, key=k_p)

    hd, h1 = enc(x, drop=0.0)
    jax.block_until_ready((hd, h1))

    assert hd.shape == (N, Cout, H, W), hd.shape
    assert h1.shape == (N, Cout, H, W), h1.shape

    hd_want, h1_want = _reference_forward(x, enc)
    err_hd = float(jnp.max(jnp.abs(hd - hd_want)))
    err_h1 = float(jnp.max(jnp.abs(h1 - h1_want)))
    assert err_hd < 1e-3 and err_h1 < 1e-3, (err_hd, err_h1)

    print("KERNEL_OK")
</pallas_src>

<mosaic_0001>
module attributes {stable_mosaic.version = 11 : i64} {
  func.func @_encoder_kernel(%arg0: i32, %arg1: memref<1x4x16x16xf32, #tpu.memory_space<vmem>>, %arg2: memref<16x36xf32, #tpu.memory_space<vmem>>, %arg3: memref<16x1xf32, #tpu.memory_space<vmem>>, %arg4: memref<8x72xf32, #tpu.memory_space<vmem>>, %arg5: memref<8x1xf32, #tpu.memory_space<vmem>>, %arg6: memref<1x8x256xf32, #tpu.memory_space<vmem>>, %arg7: memref<1x8x256xf32, #tpu.memory_space<vmem>>, %arg8: memref<4x342xf32, #tpu.memory_space<vmem>>, %arg9: memref<36x288xf32, #tpu.memory_space<vmem>>, %arg10: memref<8x288xf32, #tpu.memory_space<vmem>>, %arg11: memref<8x342xf32, #tpu.memory_space<vmem>>, %arg12: memref<72x288xf32, #tpu.memory_space<vmem>>, %arg13: memref<8x288xf32, #tpu.memory_space<vmem>>) attributes {dimension_semantics = [#tpu.dimension_semantics<parallel>], iteration_bounds = array<i64: 2>, scalar_prefetch = 0 : i64, scratch_operands = 6 : i64, tpu.core_type = #tpu.core_type<tc>, window_params = [{transform_indices = @transform_0, window_bounds = array<i64: 1, 4, 16, 16>}, {pipeline_mode = #tpu.pipeline_mode<synchronous>, transform_indices = @transform_1, window_bounds = array<i64: 16, 36>}, {pipeline_mode = #tpu.pipeline_mode<synchronous>, transform_indices = @transform_2, window_bounds = array<i64: 16, 1>}, {pipeline_mode = #tpu.pipeline_mode<synchronous>, transform_indices = @transform_3, window_bounds = array<i64: 8, 72>}, {pipeline_mode = #tpu.pipeline_mode<synchronous>, transform_indices = @transform_4, window_bounds = array<i64: 8, 1>}, {transform_indices = @transform_5, window_bounds = array<i64: 1, 8, 256>}, {transform_indices = @transform_6, window_bounds = array<i64: 1, 8, 256>}]} {
    %cst = arith.constant 0.000000e+00 : f32
    %0 = vector.broadcast %cst : f32 to vector<4x342xf32>
    %c0 = arith.constant 0 : index
    %c0_0 = arith.constant 0 : index
    %1 = vector.load %arg8[%c0, %c0_0] : memref<4x342xf32, #tpu.memory_space<vmem>>, vector<4x342xf32>
    tpu.vector_store %arg8[%c0, %c0_0], %0 {strides = array<i32>} : memref<4x342xf32, #tpu.memory_space<vmem>>, vector<4x342xf32>,
    %c0_1 = arith.constant 0 : index
    %c0_2 = arith.constant 0 : index
    %c0_3 = arith.constant 0 : index
    %c0_4 = arith.constant 0 : index
    %2 = vector.load %arg1[%c0_1, %c0_2, %c0_3, %c0_4] : memref<1x4x16x16xf32, #tpu.memory_space<vmem>>, vector<1x4x16x16xf32>
    %3 = vector.shape_cast %2 : vector<1x4x16x16xf32> to vector<4x16x16xf32>
    %4 = vector.extract_strided_slice %3 {offsets = [0, 0, 0], sizes = [4, 1, 16], strides = [1, 1, 1]} : vector<4x16x16xf32> to vector<4x1x16xf32>
    %5 = vector.shape_cast %4 : vector<4x1x16xf32> to vector<4x16xf32>
    %c0_5 = arith.constant 0 : index
    %c19 = arith.constant 19 : index
    %6 = vector.load %arg8[%c0_5, %c19] : memref<4x342xf32, #tpu.memory_space<vmem>>, vector<4x16xf32>
    tpu.vector_store %arg8[%c0_5, %c19], %5 {strides = array<i32>} : memref<4x342xf32, #tpu.memory_space<vmem>>, vector<4x16xf32>,
    %7 = vector.extract_strided_slice %3 {offsets = [0, 1, 0], sizes = [4, 1, 16], strides = [1, 1, 1]} : vector<4x16x16xf32> to vector<4x1x16xf32>
    %8 = vector.shape_cast %7 : vector<4x1x16xf32> to vector<4x16xf32>
    %c0_6 = arith.constant 0 : index
    %c37 = arith.constant 37 : index
    %9 = vector.load %arg8[%c0_6, %c37] : memref<4x342xf32, #tpu.memory_space<vmem>>, vector<4x16xf32>
    tpu.vector_store %arg8[%c0_6, %c37], %8 {strides = array<i32>} : memref<4x342xf32, #tpu.memory_space<vmem>>, vector<4x16xf32>,
    %10 = vector.extract_strided_slice %3 {offsets = [0, 2, 0], sizes = [4, 1, 16], strides = [1, 1, 1]} : vector<4x16x16xf32> to vector<4x1x16xf32>
    %11 = vector.shape_cast %10 : vector<4x1x16xf32> to vector<4x16xf32>
    %c0_7 = arith.constant 0 : index
    %c55 = arith.constant 55 : index
    %12 = vector.load %arg8[%c0_7, %c55] : memref<4x342xf32, #tpu.memory_space<vmem>>, vector<4x16xf32>
    tpu.vector_store %arg8[%c0_7, %c55], %11 {strides = array<i32>} : memref<4x342xf32, #tpu.memory_space<vmem>>, vector<4x16xf32>,
    %13 = vector.extract_strided_slice %3 {offsets = [0, 3, 0], sizes = [4, 1, 16], strides = [1, 1, 1]} : vector<4x16x16xf32> to vector<4x1x16xf32>
    %14 = vector.shape_cast %13 : vector<4x1x16xf32> to vector<4x16xf32>
    %c0_8 = arith.constant 0 : index
    %c73 = arith.constant 73 : index
    %15 = vector.load %arg8[%c0_8, %c73] : memref<4x342xf32, #tpu.memory_space<vmem>>, vector<4x16xf32>
    tpu.vector_store %arg8[%c0_8, %c73], %14 {strides = array<i32>} : memref<4x342xf32, #tpu.memory_space<vmem>>, vector<4x16xf32>,
    %16 = vector.extract_strided_slice %3 {offsets = [0, 4, 0], sizes = [4, 1, 16], strides = [1, 1, 1]} : vector<4x16x16xf32> to vector<4x1x16xf32>
    %17 = vector.shape_cast %16 : vector<4x1x16xf32> to vector<4x16xf32>
    %c0_9 = arith.constant 0 : index
    %c91 = arith.constant 91 : index
    %18 = vector.load %arg8[%c0_9, %c91] : memref<4x342xf32, #tpu.memory_space<vmem>>, vector<4x16xf32>
    tpu.vector_store %arg8[%c0_9, %c91], %17 {strides = array<i32>} : memref<4x342xf32, #tpu.memory_space<vmem>>, vector<4x16xf32>,
    %19 = vector.extract_strided_slice %3 {offsets = [0, 5, 0], sizes = [4, 1, 16], strides = [1, 1, 1]} : vector<4x16x16xf32> to vector<4x1x16xf32>
    %20 = vector.shape_cast %19 : vector<4x1x16xf32> to vector<4x16xf32>
    %c0_10 = arith.constant 0 : index
    %c109 = arith.constant 109 : index
    %21 = vector.load %arg8[%c0_10, %c109] : memref<4x342xf32, #tpu.memory_space<vmem>>, vector<4x16xf32>
    tpu.vector_store %arg8[%c0_10, %c109], %20 {strides = array<i32>} : memref<4x342xf32, #tpu.memory_space<vmem>>, vector<4x16xf32>,
    %22 = vector.extract_strided_slice %3 {offsets = [0, 6, 0], sizes = [4, 1, 16], strides = [1, 1, 1]} : vector<4x16x16xf32> to vector<4x1x16xf32>
    %23 = vector.shape_cast %22 : vector<4x1x16xf32> to vector<4x16xf32>
    %c0_11 = arith.constant 0 : index
    %c127 = arith.constant 127 : index
    %24 = vector.load %arg8[%c0_11, %c127] : memref<4x342xf32, #tpu.memory_space<vmem>>, vector<4x16xf32>
    tpu.vector_store %arg8[%c0_11, %c127], %23 {strides = array<i32>} : memref<4x342xf32, #tpu.memory_space<vmem>>, vector<4x16xf32>,
    %25 = vector.extract_strided_slice %3 {offsets = [0, 7, 0], sizes = [4, 1, 16], strides = [1, 1, 1]} : vector<4x16x16xf32> to vector<4x1x16xf32>
    %26 = vector.shape_cast %25 : vector<4x1x16xf32> to vector<4x16xf32>
    %c0_12 = arith.constant 0 : index
    %c145 = arith.constant 145 : index
    %27 = vector.load %arg8[%c0_12, %c145] : memref<4x342xf32, #tpu.memory_space<vmem>>, vector<4x16xf32>
    tpu.vector_store %arg8[%c0_12, %c145], %26 {strides = array<i32>} : memref<4x342xf32, #tpu.memory_space<vmem>>, vector<4x16xf32>,
    %28 = vector.extract_strided_slice %3 {offsets = [0, 8, 0], sizes = [4, 1, 16], strides = [1, 1, 1]} : vector<4x16x16xf32> to vector<4x1x16xf32>
    %29 = vector.shape_cast %28 : vector<4x1x16xf32> to vector<4x16xf32>
    %c0_13 = arith.constant 0 : index
    %c163 = arith.constant 163 : index
    %30 = vector.load %arg8[%c0_13, %c163] : memref<4x342xf32, #tpu.memory_space<vmem>>, vector<4x16xf32>
    tpu.vector_store %arg8[%c0_13, %c163], %29 {strides = array<i32>} : memref<4x342xf32, #tpu.memory_space<vmem>>, vector<4x16xf32>,
    %31 = vector.extract_strided_slice %3 {offsets = [0, 9, 0], sizes = [4, 1, 16], strides = [1, 1, 1]} : vector<4x16x16xf32> to vector<4x1x16xf32>
    %32 = vector.shape_cast %31 : vector<4x1x16xf32> to vector<4x16xf32>
    %c0_14 = arith.constant 0 : index
    %c181 = arith.constant 181 : index
    %33 = vector.load %arg8[%c0_14, %c181] : memref<4x342xf32, #tpu.memory_space<vmem>>, vector<4x16xf32>
    tpu.vector_store %arg8[%c0_14, %c181], %32 {strides = array<i32>} : memref<4x342xf32, #tpu.memory_space<vmem>>, vector<4x16xf32>,
    %34 = vector.extract_strided_slice %3 {offsets = [0, 10, 0], sizes = [4, 1, 16], strides = [1, 1, 1]} : vector<4x16x16xf32> to vector<4x1x16xf32>
    %35 = vector.shape_cast %34 : vector<4x1x16xf32> to vector<4x16xf32>
    %c0_15 = arith.constant 0 : index
    %c199 = arith.constant 199 : index
    %36 = vector.load %arg8[%c0_15, %c199] : memref<4x342xf32, #tpu.memory_space<vmem>>, vector<4x16xf32>
    tpu.vector_store %arg8[%c0_15, %c199], %35 {strides = array<i32>} : memref<4x342xf32, #tpu.memory_space<vmem>>, vector<4x16xf32>,
    %37 = vector.extract_strided_slice %3 {offsets = [0, 11, 0], sizes = [4, 1, 16], strides = [1, 1, 1]} : vector<4x16x16xf32> to vector<4x1x16xf32>
    %38 = vector.shape_cast %37 : vector<4x1x16xf32> to vector<4x16xf32>
    %c0_16 = arith.constant 0 : index
    %c217 = arith.constant 217 : index
    %39 = vector.load %arg8[%c0_16, %c217] : memref<4x342xf32, #tpu.memory_space<vmem>>, vector<4x16xf32>
    tpu.vector_store %arg8[%c0_16, %c217], %38 {strides = array<i32>} : memref<4x342xf32, #tpu.memory_space<vmem>>, vector<4x16xf32>,
    %40 = vector.extract_strided_slice %3 {offsets = [0, 12, 0], sizes = [4, 1, 16], strides = [1, 1, 1]} : vector<4x16x16xf32> to vector<4x1x16xf32>
    %41 = vector.shape_cast %40 : vector<4x1x16xf32> to vector<4x16xf32>
    %c0_17 = arith.constant 0 : index
    %c235 = arith.constant 235 : index
    %42 = vector.load %arg8[%c0_17, %c235] : memref<4x342xf32, #tpu.memory_space<vmem>>, vector<4x16xf32>
    tpu.vector_store %arg8[%c0_17, %c235], %41 {strides = array<i32>} : memref<4x342xf32, #tpu.memory_space<vmem>>, vector<4x16xf32>,
    %43 = vector.extract_strided_slice %3 {offsets = [0, 13, 0], sizes = [4, 1, 16], strides = [1, 1, 1]} : vector<4x16x16xf32> to vector<4x1x16xf32>
    %44 = vector.shape_cast %43 : vector<4x1x16xf32> to vector<4x16xf32>
    %c0_18 = arith.constant 0 : index
    %c253 = arith.constant 253 : index
    %45 = vector.load %arg8[%c0_18, %c253] : memref<4x342xf32, #tpu.memory_space<vmem>>, vector<4x16xf32>
    tpu.vector_store %arg8[%c0_18, %c253], %44 {strides = array<i32>} : memref<4x342xf32, #tpu.memory_space<vmem>>, vector<4x16xf32>,
    %46 = vector.extract_strided_slice %3 {offsets = [0, 14, 0], sizes = [4, 1, 16], strides = [1, 1, 1]} : vector<4x16x16xf32> to vector<4x1x16xf32>
    %47 = vector.shape_cast %46 : vector<4x1x16xf32> to vector<4x16xf32>
    %c0_19 = arith.constant 0 : index
    %c271 = arith.constant 271 : index
    %48 = vector.load %arg8[%c0_19, %c271] : memref<4x342xf32, #tpu.memory_space<vmem>>, vector<4x16xf32>
    tpu.vector_store %arg8[%c0_19, %c271], %47 {strides = array<i32>} : memref<4x342xf32, #tpu.memory_space<vmem>>, vector<4x16xf32>,
    %49 = vector.extract_strided_slice %3 {offsets = [0, 15, 0], sizes = [4, 1, 16], strides = [1, 1, 1]} : vector<4x16x16xf32> to vector<4x1x16xf32>
    %50 = vector.shape_cast %49 : vector<4x1x16xf32> to vector<4x16xf32>
    %c0_20 = arith.constant 0 : index
    %c289 = arith.constant 289 : index
    %51 = vector.load %arg8[%c0_20, %c289] : memref<4x342xf32, #tpu.memory_space<vmem>>, vector<4x16xf32>
    tpu.vector_store %arg8[%c0_20, %c289], %50 {strides = array<i32>} : memref<4x342xf32, #tpu.memory_space<vmem>>, vector<4x16xf32>,
    %c0_21 = arith.constant 0 : index
    %c0_22 = arith.constant 0 : index
    %52 = vector.load %arg8[%c0_21, %c0_22] : memref<4x342xf32, #tpu.memory_space<vmem>>, vector<4x288xf32>
    %c0_23 = arith.constant 0 : index
    %c0_24 = arith.constant 0 : index
    %53 = vector.load %arg9[%c0_23, %c0_24] : memref<36x288xf32, #tpu.memory_space<vmem>>, vector<4x288xf32>
    tpu.vector_store %arg9[%c0_23, %c0_24], %52 {strides = array<i32>} : memref<36x288xf32, #tpu.memory_space<vmem>>, vector<4x288xf32>,
    %c0_25 = arith.constant 0 : index
    %c1 = arith.constant 1 : index
    %54 = vector.load %arg8[%c0_25, %c1] : memref<4x342xf32, #tpu.memory_space<vmem>>, vector<4x288xf32>
    %c4 = arith.constant 4 : index
    %c0_26 = arith.constant 0 : index
    %55 = vector.load %arg9[%c4, %c0_26] : memref<36x288xf32, #tpu.memory_space<vmem>>, vector<4x288xf32>
    tpu.vector_store %arg9[%c4, %c0_26], %54 {strides = array<i32>} : memref<36x288xf32, #tpu.memory_space<vmem>>, vector<4x288xf32>,
    %c0_27 = arith.constant 0 : index
    %c2 = arith.constant 2 : index
    %56 = vector.load %arg8[%c0_27, %c2] : memref<4x342xf32, #tpu.memory_space<vmem>>, vector<4x288xf32>
    %c8 = arith.constant 8 : index
    %c0_28 = arith.constant 0 : index
    %57 = vector.load %arg9[%c8, %c0_28] : memref<36x288xf32, #tpu.memory_space<vmem>>, vector<4x288xf32>
    tpu.vector_store %arg9[%c8, %c0_28], %56 {strides = array<i32>} : memref<36x288xf32, #tpu.memory_space<vmem>>, vector<4x288xf32>,
    %c0_29 = arith.constant 0 : index
    %c18 = arith.constant 18 : index
    %58 = vector.load %arg8[%c0_29, %c18] : memref<4x342xf32, #tpu.memory_space<vmem>>, vector<4x288xf32>
    %c12 = arith.constant 12 : index
    %c0_30 = arith.constant 0 : index
    %59 = vector.load %arg9[%c12, %c0_30] : memref<36x288xf32, #tpu.memory_space<vmem>>, vector<4x288xf32>
    tpu.vector_store %arg9[%c12, %c0_30], %58 {strides = array<i32>} : memref<36x288xf32, #tpu.memory_space<vmem>>, vector<4x288xf32>,
    %c0_31 = arith.constant 0 : index
    %c19_32 = arith.constant 19 : index
    %60 = vector.load %arg8[%c0_31, %c19_32] : memref<4x342xf32, #tpu.memory_space<vmem>>, vector<4x288xf32>
    %c16 = arith.constant 16 : index
    %c0_33 = arith.constant 0 : index
    %61 = vector.load %arg9[%c16, %c0_33] : memref<36x288xf32, #tpu.memory_space<vmem>>, vector<4x288xf32>
    tpu.vector_store %arg9[%c16, %c0_33], %60 {strides = array<i32>} : memref<36x288xf32, #tpu.memory_space<vmem>>, vector<4x288xf32>,
    %c0_34 = arith.constant 0 : index
    %c20 = arith.constant 20 : index
    %62 = vector.load %arg8[%c0_34, %c20] : memref<4x342xf32, #tpu.memory_space<vmem>>, vector<4x288xf32>
    %c20_35 = arith.constant 20 : index
    %c0_36 = arith.constant 0 : index
    %63 = vector.load %arg9[%c20_35, %c0_36] : memref<36x288xf32, #tpu.memory_space<vmem>>, vector<4x288xf32>
    tpu.vector_store %arg9[%c20_35, %c0_36], %62 {strides = array<i32>} : memref<36x288xf32, #tpu.memory_space<vmem>>, vector<4x288xf32>,
    %c0_37 = arith.constant 0 : index
    %c36 = arith.constant 36 : index
    %64 = vector.load %arg8[%c0_37, %c36] : memref<4x342xf32, #tpu.memory_space<vmem>>, vector<4x288xf32>
    %c24 = arith.constant 24 : index
    %c0_38 = arith.constant 0 : index
    %65 = vector.load %arg9[%c24, %c0_38] : memref<36x288xf32, #tpu.memory_space<vmem>>, vector<4x288xf32>
    tpu.vector_store %arg9[%c24, %c0_38], %64 {strides = array<i32>} : memref<36x288xf32, #tpu.memory_space<vmem>>, vector<4x288xf32>,
    %c0_39 = arith.constant 0 : index
    %c37_40 = arith.constant 37 : index
    %66 = vector.load %arg8[%c0_39, %c37_40] : memref<4x342xf32, #tpu.memory_space<vmem>>, vector<4x288xf32>
    %c28 = arith.constant 28 : index
    %c0_41 = arith.constant 0 : index
    %67 = vector.load %arg9[%c28, %c0_41] : memref<36x288xf32, #tpu.memory_space<vmem>>, vector<4x288xf32>
    tpu.vector_store %arg9[%c28, %c0_41], %66 {strides = array<i32>} : memref<36x288xf32, #tpu.memory_space<vmem>>, vector<4x288xf32>,
    %c0_42 = arith.constant 0 : index
    %c38 = arith.constant 38 : index
    %68 = vector.load %arg8[%c0_42, %c38] : memref<4x342xf32, #tpu.memory_space<vmem>>, vector<4x288xf32>
    %c32 = arith.constant 32 : index
    %c0_43 = arith.constant 0 : index
    %69 = vector.load %arg9[%c32, %c0_43] : memref<36x288xf32, #tpu.memory_space<vmem>>, vector<4x288xf32>
    tpu.vector_store %arg9[%c32, %c0_43], %68 {strides = array<i32>} : memref<36x288xf32, #tpu.memory_space<vmem>>, vector<4x288xf32>,
    %c0_44 = arith.constant 0 : index
    %c0_45 = arith.constant 0 : index
    %70 = vector.load %arg2[%c0_44, %c0_45] : memref<16x36xf32, #tpu.memory_space<vmem>>, vector<16x36xf32>
    %c0_46 = arith.constant 0 : index
    %c0_47 = arith.constant 0 : index
    %71 = vector.load %arg9[%c0_46, %c0_47] : memref<36x288xf32, #tpu.memory_space<vmem>>, vector<36x288xf32>
    %cst_48 = arith.constant dense<0.000000e+00> : vector<16x288xf32>
    %72 = tpu.matmul %70, %71, %cst_48 {dimension_numbers = #tpu.dot_dimension_numbers<[1], [0], [0], [1], [0, 0, 1, 1], [], []>} : vector<16x36xf32>, vector<36x288xf32>, vector<16x288xf32> -> vector<16x288xf32>
    %c0_49 = arith.constant 0 : index
    %c0_50 = arith.constant 0 : index
    %73 = vector.load %arg3[%c0_49, %c0_50] : memref<16x1xf32, #tpu.memory_space<vmem>>, vector<16x1xf32>
    %74 = vector.broadcast %73 : vector<16x1xf32> to vector<16x288xf32>
    %75 = arith.addf %72, %74 : vector<16x288xf32>
    %76 = vector.extract_strided_slice %75 {offsets = [0, 0], sizes = [8, 288], strides = [1, 1]} : vector<16x288xf32> to vector<8x288xf32>
    %77 = vector.extract_strided_slice %75 {offsets = [8, 0], sizes = [8, 288], strides = [1, 1]} : vector<16x288xf32> to vector<8x288xf32>
    %78 = arith.negf %77 : vector<8x288xf32>
    %79 = math.exp %78 : vector<8x288xf32>
    %cst_51 = arith.constant 1.000000e+00 : f32
    %80 = vector.broadcast %cst_51 : f32 to vector<8x288xf32>
    %81 = arith.addf %80, %79 : vector<8x288xf32>
    %82 = arith.divf %80, %81 : vector<8x288xf32>
    %83 = arith.mulf %76, %82 : vector<8x288xf32>
    %c0_52 = arith.constant 0 : index
    %c0_53 = arith.constant 0 : index
    %84 = vector.load %arg10[%c0_52, %c0_53] : memref<8x288xf32, #tpu.memory_space<vmem>>, vector<8x288xf32>
    tpu.vector_store %arg10[%c0_52, %c0_53], %83 {strides = array<i32>} : memref<8x288xf32, #tpu.memory_space<vmem>>, vector<8x288xf32>,
    %cst_54 = arith.constant 0.000000e+00 : f32
    %85 = vector.broadcast %cst_54 : f32 to vector<8x342xf32>
    %c0_55 = arith.constant 0 : index
    %c0_56 = arith.constant 0 : index
    %86 = vector.load %arg11[%c0_55, %c0_56] : memref<8x342xf32, #tpu.memory_space<vmem>>, vector<8x342xf32>
    tpu.vector_store %arg11[%c0_55, %c0_56], %85 {strides = array<i32>} : memref<8x342xf32, #tpu.memory_space<vmem>>, vector<8x342xf32>,
    %c0_57 = arith.constant 0 : index
    %c0_58 = arith.constant 0 : index
    %87 = vector.load %arg10[%c0_57, %c0_58] : memref<8x288xf32, #tpu.memory_space<vmem>>, vector<8x16xf32>
    %c0_59 = arith.constant 0 : index
    %c0_60 = arith.constant 0 : index
    %c0_61 = arith.constant 0 : index
    %88 = vector.load %arg7[%c0_59, %c0_60, %c0_61] : memref<1x8x256xf32, #tpu.memory_space<vmem>>, vector<1x8x16xf32>
    %89 = vector.shape_cast %88 : vector<1x8x16xf32> to vector<8x16xf32>
    %90 = vector.shape_cast %87 : vector<8x16xf32> to vector<1x8x16xf32>
    tpu.vector_store %arg7[%c0_59, %c0_60, %c0_61], %90 {strides = array<i32>} : memref<1x8x256xf32, #tpu.memory_space<vmem>>, vector<1x8x16xf32>,
    %c0_62 = arith.constant 0 : index
    %c19_63 = arith.constant 19 : index
    %91 = vector.load %arg11[%c0_62, %c19_63] : memref<8x342xf32, #tpu.memory_space<vmem>>, vector<8x16xf32>
    tpu.vector_store %arg11[%c0_62, %c19_63], %87 {strides = array<i32>} : memref<8x342xf32, #tpu.memory_space<vmem>>, vector<8x16xf32>,
    %c0_64 = arith.constant 0 : index
    %c18_65 = arith.constant 18 : index
    %92 = vector.load %arg10[%c0_64, %c18_65] : memref<8x288xf32, #tpu.memory_space<vmem>>, vector<8x16xf32>
    %c0_66 = arith.constant 0 : index
    %c0_67 = arith.constant 0 : index
    %c16_68 = arith.constant 16 : index
    %93 = vector.load %arg7[%c0_66, %c0_67, %c16_68] : memref<1x8x256xf32, #tpu.memory_space<vmem>>, vector<1x8x16xf32>
    %94 = vector.shape_cast %93 : vector<1x8x16xf32> to vector<8x16xf32>
    %95 = vector.shape_cast %92 : vector<8x16xf32> to vector<1x8x16xf32>
    tpu.vector_store %arg7[%c0_66, %c0_67, %c16_68], %95 {strides = array<i32>} : memref<1x8x256xf32, #tpu.memory_space<vmem>>, vector<1x8x16xf32>,
    %c0_69 = arith.constant 0 : index
    %c37_70 = arith.constant 37 : index
    %96 = vector.load %arg11[%c0_69, %c37_70] : memref<8x342xf32, #tpu.memory_space<vmem>>, vector<8x16xf32>
    tpu.vector_store %arg11[%c0_69, %c37_70], %92 {strides = array<i32>} : memref<8x342xf32, #tpu.memory_space<vmem>>, vector<8x16xf32>,
    %c0_71 = arith.constant 0 : index
    %c36_72 = arith.constant 36 : index
    %97 = vector.load %arg10[%c0_71, %c36_72] : memref<8x288xf32, #tpu.memory_space<vmem>>, vector<8x16xf32>
    %c0_73 = arith.constant 0 : index
    %c0_74 = arith.constant 0 : index
    %c32_75 = arith.constant 32 : index
    %98 = vector.load %arg7[%c0_73, %c0_74, %c32_75] : memref<1x8x256xf32, #tpu.memory_space<vmem>>, vector<1x8x16xf32>
    %99 = vector.shape_cast %98 : vector<1x8x16xf32> to vector<8x16xf32>
    %100 = vector.shape_cast %97 : vector<8x16xf32> to vector<1x8x16xf32>
    tpu.vector_store %arg7[%c0_73, %c0_74, %c32_75], %100 {strides = array<i32>} : memref<1x8x256xf32, #tpu.memory_space<vmem>>, vector<1x8x16xf32>,
    %c0_76 = arith.constant 0 : index
    %c55_77 = arith.constant 55 : index
    %101 = vector.load %arg11[%c0_76, %c55_77] : memref<8x342xf32, #tpu.memory_space<vmem>>, vector<8x16xf32>
    tpu.vector_store %arg11[%c0_76, %c55_77], %97 {strides = array<i32>} : memref<8x342xf32, #tpu.memory_space<vmem>>, vector<8x16xf32>,
    %c0_78 = arith.constant 0 : index
    %c54 = arith.constant 54 : index
    %102 = vector.load %arg10[%c0_78, %c54] : memref<8x288xf32, #tpu.memory_space<vmem>>, vector<8x16xf32>
    %c0_79 = arith.constant 0 : index
    %c0_80 = arith.constant 0 : index
    %c48 = arith.constant 48 : index
    %103 = vector.load %arg7[%c0_79, %c0_80, %c48] : memref<1x8x256xf32, #tpu.memory_space<vmem>>, vector<1x8x16xf32>
    %104 = vector.shape_cast %103 : vector<1x8x16xf32> to vector<8x16xf32>
    %105 = vector.shape_cast %102 : vector<8x16xf32> to vector<1x8x16xf32>
    tpu.vector_store %arg7[%c0_79, %c0_80, %c48], %105 {strides = array<i32>} : memref<1x8x256xf32, #tpu.memory_space<vmem>>, vector<1x8x16xf32>,
    %c0_81 = arith.constant 0 : index
    %c73_82 = arith.constant 73 : index
    %106 = vector.load %arg11[%c0_81, %c73_82] : memref<8x342xf32, #tpu.memory_space<vmem>>, vector<8x16xf32>
    tpu.vector_store %arg11[%c0_81, %c73_82], %102 {strides = array<i32>} : memref<8x342xf32, #tpu.memory_space<vmem>>, vector<8x16xf32>,
    %c0_83 = arith.constant 0 : index
    %c72 = arith.constant 72 : index
    %107 = vector.load %arg10[%c0_83, %c72] : memref<8x288xf32, #tpu.memory_space<vmem>>, vector<8x16xf32>
    %c0_84 = arith.constant 0 : index
    %c0_85 = arith.constant 0 : index
    %c64 = arith.constant 64 : index
    %108 = vector.load %arg7[%c0_84, %c0_85, %c64] : memref<1x8x256xf32, #tpu.memory_space<vmem>>, vector<1x8x16xf32>
    %109 = vector.shape_cast %108 : vector<1x8x16xf32> to vector<8x16xf32>
    %110 = vector.shape_cast %107 : vector<8x16xf32> to vector<1x8x16xf32>
    tpu.vector_store %arg7[%c0_84, %c0_85, %c64], %110 {strides = array<i32>} : memref<1x8x256xf32, #tpu.memory_space<vmem>>, vector<1x8x16xf32>,
    %c0_86 = arith.constant 0 : index
    %c91_87 = arith.constant 91 : index
    %111 = vector.load %arg11[%c0_86, %c91_87] : memref<8x342xf32, #tpu.memory_space<vmem>>, vector<8x16xf32>
    tpu.vector_store %arg11[%c0_86, %c91_87], %107 {strides = array<i32>} : memref<8x342xf32, #tpu.memory_space<vmem>>, vector<8x16xf32>,
    %c0_88 = arith.constant 0 : index
    %c90 = arith.constant 90 : index
    %112 = vector.load %arg10[%c0_88, %c90] : memref<8x288xf32, #tpu.memory_space<vmem>>, vector<8x16xf32>
    %c0_89 = arith.constant 0 : index
    %c0_90 = arith.constant 0 : index
    %c80 = arith.constant 80 : index
    %113 = vector.load %arg7[%c0_89, %c0_90, %c80] : memref<1x8x256xf32, #tpu.memory_space<vmem>>, vector<1x8x16xf32>
    %114 = vector.shape_cast %113 : vector<1x8x16xf32> to vector<8x16xf32>
    %115 = vector.shape_cast %112 : vector<8x16xf32> to vector<1x8x16xf32>
    tpu.vector_store %arg7[%c0_89, %c0_90, %c80], %115 {strides = array<i32>} : memref<1x8x256xf32, #tpu.memory_space<vmem>>, vector<1x8x16xf32>,
    %c0_91 = arith.constant 0 : index
    %c109_92 = arith.constant 109 : index
    %116 = vector.load %arg11[%c0_91, %c109_92] : memref<8x342xf32, #tpu.memory_space<vmem>>, vector<8x16xf32>
    tpu.vector_store %arg11[%c0_91, %c109_92], %112 {strides = array<i32>} : memref<8x342xf32, #tpu.memory_space<vmem>>, vector<8x16xf32>,
    %c0_93 = arith.constant 0 : index
    %c108 = arith.constant 108 : index
    %117 = vector.load %arg10[%c0_93, %c108] : memref<8x288xf32, #tpu.memory_space<vmem>>, vector<8x16xf32>
    %c0_94 = arith.constant 0 : index
    %c0_95 = arith.constant 0 : index
    %c96 = arith.constant 96 : index
    %118 = vector.load %arg7[%c0_94, %c0_95, %c96] : memref<1x8x256xf32, #tpu.memory_space<vmem>>, vector<1x8x16xf32>
    %119 = vector.shape_cast %118 : vector<1x8x16xf32> to vector<8x16xf32>
    %120 = vector.shape_cast %117 : vector<8x16xf32> to vector<1x8x16xf32>
    tpu.vector_store %arg7[%c0_94, %c0_95, %c96], %120 {strides = array<i32>} : memref<1x8x256xf32, #tpu.memory_space<vmem>>, vector<1x8x16xf32>,
    %c0_96 = arith.constant 0 : index
    %c127_97 = arith.constant 127 : index
    %121 = vector.load %arg11[%c0_96, %c127_97] : memref<8x342xf32, #tpu.memory_space<vmem>>, vector<8x16xf32>
    tpu.vector_store %arg11[%c0_96, %c127_97], %117 {strides = array<i32>} : memref<8x342xf32, #tpu.memory_space<vmem>>, vector<8x16xf32>,
    %c0_98 = arith.constant 0 : index
    %c126 = arith.constant 126 : index
    %122 = vector.load %arg10[%c0_98, %c126] : memref<8x288xf32, #tpu.memory_space<vmem>>, vector<8x16xf32>
    %c0_99 = arith.constant 0 : index
    %c0_100 = arith.constant 0 : index
    %c112 = arith.constant 112 : index
    %123 = vector.load %arg7[%c0_99, %c0_100, %c112] : memref<1x8x256xf32, #tpu.memory_space<vmem>>, vector<1x8x16xf32>
    %124 = vector.shape_cast %123 : vector<1x8x16xf32> to vector<8x16xf32>
    %125 = vector.shape_cast %122 : vector<8x16xf32> to vector<1x8x16xf32>
    tpu.vector_store %arg7[%c0_99, %c0_100, %c112], %125 {strides = array<i32>} : memref<1x8x256xf32, #tpu.memory_space<vmem>>, vector<1x8x16xf32>,
    %c0_101 = arith.constant 0 : index
    %c145_102 = arith.constant 145 : index
    %126 = vector.load %arg11[%c0_101, %c145_102] : memref<8x342xf32, #tpu.memory_space<vmem>>, vector<8x16xf32>
    tpu.vector_store %arg11[%c0_101, %c145_102], %122 {strides = array<i32>} : memref<8x342xf32, #tpu.memory_space<vmem>>, vector<8x16xf32>,
    %c0_103 = arith.constant 0 : index
    %c144 = arith.constant 144 : index
    %127 = vector.load %arg10[%c0_103, %c144] : memref<8x288xf32, #tpu.memory_space<vmem>>, vector<8x16xf32>
    %c0_104 = arith.constant 0 : index
    %c0_105 = arith.constant 0 : index
    %c128 = arith.constant 128 : index
    %128 = vector.load %arg7[%c0_104, %c0_105, %c128] : memref<1x8x256xf32, #tpu.memory_space<vmem>>, vector<1x8x16xf32>
    %129 = vector.shape_cast %128 : vector<1x8x16xf32> to vector<8x16xf32>
    %130 = vector.shape_cast %127 : vector<8x16xf32> to vector<1x8x16xf32>
    tpu.vector_store %arg7[%c0_104, %c0_105, %c128], %130 {strides = array<i32>} : memref<1x8x256xf32, #tpu.memory_space<vmem>>, vector<1x8x16xf32>,
    %c0_106 = arith.constant 0 : index
    %c163_107 = arith.constant 163 : index
    %131 = vector.load %arg11[%c0_106, %c163_107] : memref<8x342xf32, #tpu.memory_space<vmem>>, vector<8x16xf32>
    tpu.vector_store %arg11[%c0_106, %c163_107], %127 {strides = array<i32>} : memref<8x342xf32, #tpu.memory_space<vmem>>, vector<8x16xf32>,
    %c0_108 = arith.constant 0 : index
    %c162 = arith.constant 162 : index
    %132 = vector.load %arg10[%c0_108, %c162] : memref<8x288xf32, #tpu.memory_space<vmem>>, vector<8x16xf32>
    %c0_109 = arith.constant 0 : index
    %c0_110 = arith.constant 0 : index
    %c144_111 = arith.constant 144 : index
    %133 = vector.load %arg7[%c0_109, %c0_110, %c144_111] : memref<1x8x256xf32, #tpu.memory_space<vmem>>, vector<1x8x16xf32>
    %134 = vector.shape_cast %133 : vector<1x8x16xf32> to vector<8x16xf32>
    %135 = vector.shape_cast %132 : vector<8x16xf32> to vector<1x8x16xf32>
    tpu.vector_store %arg7[%c0_109, %c0_110, %c144_111], %135 {strides = array<i32>} : memref<1x8x256xf32, #tpu.memory_space<vmem>>, vector<1x8x16xf32>,
    %c0_112 = arith.constant 0 : index
    %c181_113 = arith.constant 181 : index
    %136 = vector.load %arg11[%c0_112, %c181_113] : memref<8x342xf32, #tpu.memory_space<vmem>>, vector<8x16xf32>
    tpu.vector_store %arg11[%c0_112, %c181_113], %132 {strides = array<i32>} : memref<8x342xf32, #tpu.memory_space<vmem>>, vector<8x16xf32>,
    %c0_114 = arith.constant 0 : index
    %c180 = arith.constant 180 : index
    %137 = vector.load %arg10[%c0_114, %c180] : memref<8x288xf32, #tpu.memory_space<vmem>>, vector<8x16xf32>
    %c0_115 = arith.constant 0 : index
    %c0_116 = arith.constant 0 : index
    %c160 = arith.constant 160 : index
    %138 = vector.load %arg7[%c0_115, %c0_116, %c160] : memref<1x8x256xf32, #tpu.memory_space<vmem>>, vector<1x8x16xf32>
    %139 = vector.shape_cast %138 : vector<1x8x16xf32> to vector<8x16xf32>
    %140 = vector.shape_cast %137 : vector<8x16xf32> to vector<1x8x16xf32>
    tpu.vector_store %arg7[%c0_115, %c0_116, %c160], %140 {strides = array<i32>} : memref<1x8x256xf32, #tpu.memory_space<vmem>>, vector<1x8x16xf32>,
    %c0_117 = arith.constant 0 : index
    %c199_118 = arith.constant 199 : index
    %141 = vector.load %arg11[%c0_117, %c199_118] : memref<8x342xf32, #tpu.memory_space<vmem>>, vector<8x16xf32>
    tpu.vector_store %arg11[%c0_117, %c199_118], %137 {strides = array<i32>} : memref<8x342xf32, #tpu.memory_space<vmem>>, vector<8x16xf32>,
    %c0_119 = arith.constant 0 : index
    %c198 = arith.constant 198 : index
    %142 = vector.load %arg10[%c0_119, %c198] : memref<8x288xf32, #tpu.memory_space<vmem>>, vector<8x16xf32>
    %c0_120 = arith.constant 0 : index
    %c0_121 = arith.constant 0 : index
    %c176 = arith.constant 176 : index
    %143 = vector.load %arg7[%c0_120, %c0_121, %c176] : memref<1x8x256xf32, #tpu.memory_space<vmem>>, vector<1x8x16xf32>
    %144 = vector.shape_cast %143 : vector<1x8x16xf32> to vector<8x16xf32>
    %145 = vector.shape_cast %142 : vector<8x16xf32> to vector<1x8x16xf32>
    tpu.vector_store %arg7[%c0_120, %c0_121, %c176], %145 {strides = array<i32>} : memref<1x8x256xf32, #tpu.memory_space<vmem>>, vector<1x8x16xf32>,
    %c0_122 = arith.constant 0 : index
    %c217_123 = arith.constant 217 : index
    %146 = vector.load %arg11[%c0_122, %c217_123] : memref<8x342xf32, #tpu.memory_space<vmem>>, vector<8x16xf32>
    tpu.vector_store %arg11[%c0_122, %c217_123], %142 {strides = array<i32>} : memref<8x342xf32, #tpu.memory_space<vmem>>, vector<8x16xf32>,
    %c0_124 = arith.constant 0 : index
    %c216 = arith.constant 216 : index
    %147 = vector.load %arg10[%c0_124, %c216] : memref<8x288xf32, #tpu.memory_space<vmem>>, vector<8x16xf32>
    %c0_125 = arith.constant 0 : index
    %c0_126 = arith.constant 0 : index
    %c192 = arith.constant 192 : index
    %148 = vector.load %arg7[%c0_125, %c0_126, %c192] : memref<1x8x256xf32, #tpu.memory_space<vmem>>, vector<1x8x16xf32>
    %149 = vector.shape_cast %148 : vector<1x8x16xf32> to vector<8x16xf32>
    %150 = vector.shape_cast %147 : vector<8x16xf32> to vector<1x8x16xf32>
    tpu.vector_store %arg7[%c0_125, %c0_126, %c192], %150 {strides = array<i32>} : memref<1x8x256xf32, #tpu.memory_space<vmem>>, vector<1x8x16xf32>,
    %c0_127 = arith.constant 0 : index
    %c235_128 = arith.constant 235 : index
    %151 = vector.load %arg11[%c0_127, %c235_128] : memref<8x342xf32, #tpu.memory_space<vmem>>, vector<8x16xf32>
    tpu.vector_store %arg11[%c0_127, %c235_128], %147 {strides = array<i32>} : memref<8x342xf32, #tpu.memory_space<vmem>>, vector<8x16xf32>,
    %c0_129 = arith.constant 0 : index
    %c234 = arith.constant 234 : index
    %152 = vector.load %arg10[%c0_129, %c234] : memref<8x288xf32, #tpu.memory_space<vmem>>, vector<8x16xf32>
    %c0_130 = arith.constant 0 : index
    %c0_131 = arith.constant 0 : index
    %c208 = arith.constant 208 : index
    %153 = vector.load %arg7[%c0_130, %c0_131, %c208] : memref<1x8x256xf32, #tpu.memory_space<vmem>>, vector<1x8x16xf32>
    %154 = vector.shape_cast %153 : vector<1x8x16xf32> to vector<8x16xf32>
    %155 = vector.shape_cast %152 : vector<8x16xf32> to vector<1x8x16xf32>
    tpu.vector_store %arg7[%c0_130, %c0_131, %c208], %155 {strides = array<i32>} : memref<1x8x256xf32, #tpu.memory_space<vmem>>, vector<1x8x16xf32>,
    %c0_132 = arith.constant 0 : index
    %c253_133 = arith.constant 253 : index
    %156 = vector.load %arg11[%c0_132, %c253_133] : memref<8x342xf32, #tpu.memory_space<vmem>>, vector<8x16xf32>
    tpu.vector_store %arg11[%c0_132, %c253_133], %152 {strides = array<i32>} : memref<8x342xf32, #tpu.memory_space<vmem>>, vector<8x16xf32>,
    %c0_134 = arith.constant 0 : index
    %c252 = arith.constant 252 : index
    %157 = vector.load %arg10[%c0_134, %c252] : memref<8x288xf32, #tpu.memory_space<vmem>>, vector<8x16xf32>
    %c0_135 = arith.constant 0 : index
    %c0_136 = arith.constant 0 : index
    %c224 = arith.constant 224 : index
    %158 = vector.load %arg7[%c0_135, %c0_136, %c224] : memref<1x8x256xf32, #tpu.memory_space<vmem>>, vector<1x8x16xf32>
    %159 = vector.shape_cast %158 : vector<1x8x16xf32> to vector<8x16xf32>
    %160 = vector.shape_cast %157 : vector<8x16xf32> to vector<1x8x16xf32>
    tpu.vector_store %arg7[%c0_135, %c0_136, %c224], %160 {strides = array<i32>} : memref<1x8x256xf32, #tpu.memory_space<vmem>>, vector<1x8x16xf32>,
    %c0_137 = arith.constant 0 : index
    %c271_138 = arith.constant 271 : index
    %161 = vector.load %arg11[%c0_137, %c271_138] : memref<8x342xf32, #tpu.memory_space<vmem>>, vector<8x16xf32>
    tpu.vector_store %arg11[%c0_137, %c271_138], %157 {strides = array<i32>} : memref<8x342xf32, #tpu.memory_space<vmem>>, vector<8x16xf32>,
    %c0_139 = arith.constant 0 : index
    %c270 = arith.constant 270 : index
    %162 = vector.load %arg10[%c0_139, %c270] : memref<8x288xf32, #tpu.memory_space<vmem>>, vector<8x16xf32>
    %c0_140 = arith.constant 0 : index
    %c0_141 = arith.constant 0 : index
    %c240 = arith.constant 240 : index
    %163 = vector.load %arg7[%c0_140, %c0_141, %c240] : memref<1x8x256xf32, #tpu.memory_space<vmem>>, vector<1x8x16xf32>
    %164 = vector.shape_cast %163 : vector<1x8x16xf32> to vector<8x16xf32>
    %165 = vector.shape_cast %162 : vector<8x16xf32> to vector<1x8x16xf32>
    tpu.vector_store %arg7[%c0_140, %c0_141, %c240], %165 {strides = array<i32>} : memref<1x8x256xf32, #tpu.memory_space<vmem>>, vector<1x8x16xf32>,
    %c0_142 = arith.constant 0 : index
    %c289_143 = arith.constant 289 : index
    %166 = vector.load %arg11[%c0_142, %c289_143] : memref<8x342xf32, #tpu.memory_space<vmem>>, vector<8x16xf32>
    tpu.vector_store %arg11[%c0_142, %c289_143], %162 {strides = array<i32>} : memref<8x342xf32, #tpu.memory_space<vmem>>, vector<8x16xf32>,
    %c0_144 = arith.constant 0 : index
    %c0_145 = arith.constant 0 : index
    %167 = vector.load %arg11[%c0_144, %c0_145] : memref<8x342xf32, #tpu.memory_space<vmem>>, vector<8x288xf32>
    %c0_146 = arith.constant 0 : index
    %c0_147 = arith.constant 0 : index
    %168 = vector.load %arg12[%c0_146, %c0_147] : memref<72x288xf32, #tpu.memory_space<vmem>>, vector<8x288xf32>
    tpu.vector_store %arg12[%c0_146, %c0_147], %167 {strides = array<i32>} : memref<72x288xf32, #tpu.memory_space<vmem>>, vector<8x288xf32>,
    %c0_148 = arith.constant 0 : index
    %c1_149 = arith.constant 1 : index
    %169 = vector.load %arg11[%c0_148, %c1_149] : memref<8x342xf32, #tpu.memory_space<vmem>>, vector<8x288xf32>
    %c8_150 = arith.constant 8 : index
    %c0_151 = arith.constant 0 : index
    %170 = vector.load %arg12[%c8_150, %c0_151] : memref<72x288xf32, #tpu.memory_space<vmem>>, vector<8x288xf32>
    tpu.vector_store %arg12[%c8_150, %c0_151], %169 {strides = array<i32>} : memref<72x288xf32, #tpu.memory_space<vmem>>, vector<8x288xf32>,
    %c0_152 = arith.constant 0 : index
    %c2_153 = arith.constant 2 : index
    %171 = vector.load %arg11[%c0_152, %c2_153] : memref<8x342xf32, #tpu.memory_space<vmem>>, vector<8x288xf32>
    %c16_154 = arith.constant 16 : index
    %c0_155 = arith.constant 0 : index
    %172 = vector.load %arg12[%c16_154, %c0_155] : memref<72x288xf32, #tpu.memory_space<vmem>>, vector<8x288xf32>
    tpu.vector_store %arg12[%c16_154, %c0_155], %171 {strides = array<i32>} : memref<72x288xf32, #tpu.memory_space<vmem>>, vector<8x288xf32>,
    %c0_156 = arith.constant 0 : index
    %c18_157 = arith.constant 18 : index
    %173 = vector.load %arg11[%c0_156, %c18_157] : memref<8x342xf32, #tpu.memory_space<vmem>>, vector<8x288xf32>
    %c24_158 = arith.constant 24 : index
    %c0_159 = arith.constant 0 : index
    %174 = vector.load %arg12[%c24_158, %c0_159] : memref<72x288xf32, #tpu.memory_space<vmem>>, vector<8x288xf32>
    tpu.vector_store %arg12[%c24_158, %c0_159], %173 {strides = array<i32>} : memref<72x288xf32, #tpu.memory_space<vmem>>, vector<8x288xf32>,
    %c0_160 = arith.constant 0 : index
    %c19_161 = arith.constant 19 : index
    %175 = vector.load %arg11[%c0_160, %c19_161] : memref<8x342xf32, #tpu.memory_space<vmem>>, vector<8x288xf32>
    %c32_162 = arith.constant 32 : index
    %c0_163 = arith.constant 0 : index
    %176 = vector.load %arg12[%c32_162, %c0_163] : memref<72x288xf32, #tpu.memory_space<vmem>>, vector<8x288xf32>
    tpu.vector_store %arg12[%c32_162, %c0_163], %175 {strides = array<i32>} : memref<72x288xf32, #tpu.memory_space<vmem>>, vector<8x288xf32>,
    %c0_164 = arith.constant 0 : index
    %c20_165 = arith.constant 20 : index
    %177 = vector.load %arg11[%c0_164, %c20_165] : memref<8x342xf32, #tpu.memory_space<vmem>>, vector<8x288xf32>
    %c40 = arith.constant 40 : index
    %c0_166 = arith.constant 0 : index
    %178 = vector.load %arg12[%c40, %c0_166] : memref<72x288xf32, #tpu.memory_space<vmem>>, vector<8x288xf32>
    tpu.vector_store %arg12[%c40, %c0_166], %177 {strides = array<i32>} : memref<72x288xf32, #tpu.memory_space<vmem>>, vector<8x288xf32>,
    %c0_167 = arith.constant 0 : index
    %c36_168 = arith.constant 36 : index
    %179 = vector.load %arg11[%c0_167, %c36_168] : memref<8x342xf32, #tpu.memory_space<vmem>>, vector<8x288xf32>
    %c48_169 = arith.constant 48 : index
    %c0_170 = arith.constant 0 : index
    %180 = vector.load %arg12[%c48_169, %c0_170] : memref<72x288xf32, #tpu.memory_space<vmem>>, vector<8x288xf32>
    tpu.vector_store %arg12[%c48_169, %c0_170], %179 {strides = array<i32>} : memref<72x288xf32, #tpu.memory_space<vmem>>, vector<8x288xf32>,
    %c0_171 = arith.constant 0 : index
    %c37_172 = arith.constant 37 : index
    %181 = vector.load %arg11[%c0_171, %c37_172] : memref<8x342xf32, #tpu.memory_space<vmem>>, vector<8x288xf32>
    %c56 = arith.constant 56 : index
    %c0_173 = arith.constant 0 : index
    %182 = vector.load %arg12[%c56, %c0_173] : memref<72x288xf32, #tpu.memory_space<vmem>>, vector<8x288xf32>
    tpu.vector_store %arg12[%c56, %c0_173], %181 {strides = array<i32>} : memref<72x288xf32, #tpu.memory_space<vmem>>, vector<8x288xf32>,
    %c0_174 = arith.constant 0 : index
    %c38_175 = arith.constant 38 : index
    %183 = vector.load %arg11[%c0_174, %c38_175] : memref<8x342xf32, #tpu.memory_space<vmem>>, vector<8x288xf32>
    %c64_176 = arith.constant 64 : index
    %c0_177 = arith.constant 0 : index
    %184 = vector.load %arg12[%c64_176, %c0_177] : memref<72x288xf32, #tpu.memory_space<vmem>>, vector<8x288xf32>
    tpu.vector_store %arg12[%c64_176, %c0_177], %183 {strides = array<i32>} : memref<72x288xf32, #tpu.memory_space<vmem>>, vector<8x288xf32>,
    %c0_178 = arith.constant 0 : index
    %c0_179 = arith.constant 0 : index
    %185 = vector.load %arg4[%c0_178, %c0_179] : memref<8x72xf32, #tpu.memory_space<vmem>>, vector<8x72xf32>
    %c0_180 = arith.constant 0 : index
    %c0_181 = arith.constant 0 : index
    %186 = vector.load %arg12[%c0_180, %c0_181] : memref<72x288xf32, #tpu.memory_space<vmem>>, vector<72x288xf32>
    %cst_182 = arith.constant dense<0.000000e+00> : vector<8x288xf32>
    %187 = tpu.matmul %185, %186, %cst_182 {dimension_numbers = #tpu.dot_dimension_numbers<[1], [0], [0], [1], [0, 0, 1, 1], [], []>} : vector<8x72xf32>, vector<72x288xf32>, vector<8x288xf32> -> vector<8x288xf32>
    %c0_183 = arith.constant 0 : index
    %c0_184 = arith.constant 0 : index
    %188 = vector.load %arg5[%c0_183, %c0_184] : memref<8x1xf32, #tpu.memory_space<vmem>>, vector<8x1xf32>
    %189 = vector.broadcast %188 : vector<8x1xf32> to vector<8x288xf32>
    %190 = arith.addf %187, %189 : vector<8x288xf32>
    %c0_185 = arith.constant 0 : index
    %c0_186 = arith.constant 0 : index
    %191 = vector.load %arg13[%c0_185, %c0_186] : memref<8x288xf32, #tpu.memory_space<vmem>>, vector<8x288xf32>
    tpu.vector_store %arg13[%c0_185, %c0_186], %190 {strides = array<i32>} : memref<8x288xf32, #tpu.memory_space<vmem>>, vector<8x288xf32>,
    %c0_187 = arith.constant 0 : index
    %c0_188 = arith.constant 0 : index
    %192 = vector.load %arg13[%c0_187, %c0_188] : memref<8x288xf32, #tpu.memory_space<vmem>>, vector<8x16xf32>
    %c0_189 = arith.constant 0 : index
    %c0_190 = arith.constant 0 : index
    %c0_191 = arith.constant 0 : index
    %193 = vector.load %arg6[%c0_189, %c0_190, %c0_191] : memref<1x8x256xf32, #tpu.memory_space<vmem>>, vector<1x8x16xf32>
    %194 = vector.shape_cast %193 : vector<1x8x16xf32> to vector<8x16xf32>
    %195 = vector.shape_cast %192 : vector<8x16xf32> to vector<1x8x16xf32>
    tpu.vector_store %arg6[%c0_189, %c0_190, %c0_191], %195 {strides = array<i32>} : memref<1x8x256xf32, #tpu.memory_space<vmem>>, vector<1x8x16xf32>,
    %c0_192 = arith.constant 0 : index
    %c18_193 = arith.constant 18 : index
    %196 = vector.load %arg13[%c0_192, %c18_193] : memref<8x288xf32, #tpu.memory_space<vmem>>, vector<8x16xf32>
    %c0_194 = arith.constant 0 : index
    %c0_195 = arith.constant 0 : index
    %c16_196 = arith.constant 16 : index
    %197 = vector.load %arg6[%c0_194, %c0_195, %c16_196] : memref<1x8x256xf32, #tpu.memory_space<vmem>>, vector<1x8x16xf32>
    %198 = vector.shape_cast %197 : vector<1x8x16xf32> to vector<8x16xf32>
    %199 = vector.shape_cast %196 : vector<8x16xf32> to vector<1x8x16xf32>
    tpu.vector_store %arg6[%c0_194, %c0_195, %c16_196], %199 {strides = array<i32>} : memref<1x8x256xf32, #tpu.memory_space<vmem>>, vector<1x8x16xf32>,
    %c0_197 = arith.constant 0 : index
    %c36_198 = arith.constant 36 : index
    %200 = vector.load %arg13[%c0_197, %c36_198] : memref<8x288xf32, #tpu.memory_space<vmem>>, vector<8x16xf32>
    %c0_199 = arith.constant 0 : index
    %c0_200 = arith.constant 0 : index
    %c32_201 = arith.constant 32 : index
    %201 = vector.load %arg6[%c0_199, %c0_200, %c32_201] : memref<1x8x256xf32, #tpu.memory_space<vmem>>, vector<1x8x16xf32>
    %202 = vector.shape_cast %201 : vector<1x8x16xf32> to vector<8x16xf32>
    %203 = vector.shape_cast %200 : vector<8x16xf32> to vector<1x8x16xf32>
    tpu.vector_store %arg6[%c0_199, %c0_200, %c32_201], %203 {strides = array<i32>} : memref<1x8x256xf32, #tpu.memory_space<vmem>>, vector<1x8x16xf32>,
    %c0_202 = arith.constant 0 : index
    %c54_203 = arith.constant 54 : index
    %204 = vector.load %arg13[%c0_202, %c54_203] : memref<8x288xf32, #tpu.memory_space<vmem>>, vector<8x16xf32>
    %c0_204 = arith.constant 0 : index
    %c0_205 = arith.constant 0 : index
    %c48_206 = arith.constant 48 : index
    %205 = vector.load %arg6[%c0_204, %c0_205, %c48_206] : memref<1x8x256xf32, #tpu.memory_space<vmem>>, vector<1x8x16xf32>
    %206 = vector.shape_cast %205 : vector<1x8x16xf32> to vector<8x16xf32>
    %207 = vector.shape_cast %204 : vector<8x16xf32> to vector<1x8x16xf32>
    tpu.vector_store %arg6[%c0_204, %c0_205, %c48_206], %207 {strides = array<i32>} : memref<1x8x256xf32, #tpu.memory_space<vmem>>, vector<1x8x16xf32>,
    %c0_207 = arith.constant 0 : index
    %c72_208 = arith.constant 72 : index
    %208 = vector.load %arg13[%c0_207, %c72_208] : memref<8x288xf32, #tpu.memory_space<vmem>>, vector<8x16xf32>
    %c0_209 = arith.constant 0 : index
    %c0_210 = arith.constant 0 : index
    %c64_211 = arith.constant 64 : index
    %209 = vector.load %arg6[%c0_209, %c0_210, %c64_211] : memref<1x8x256xf32, #tpu.memory_space<vmem>>, vector<1x8x16xf32>
    %210 = vector.shape_cast %209 : vector<1x8x16xf32> to vector<8x16xf32>
    %211 = vector.shape_cast %208 : vector<8x16xf32> to vector<1x8x16xf32>
    tpu.vector_store %arg6[%c0_209, %c0_210, %c64_211], %211 {strides = array<i32>} : memref<1x8x256xf32, #tpu.memory_space<vmem>>, vector<1x8x16xf32>,
    %c0_212 = arith.constant 0 : index
    %c90_213 = arith.constant 90 : index
    %212 = vector.load %arg13[%c0_212, %c90_213] : memref<8x288xf32, #tpu.memory_space<vmem>>, vector<8x16xf32>
    %c0_214 = arith.constant 0 : index
    %c0_215 = arith.constant 0 : index
    %c80_216 = arith.constant 80 : index
    %213 = vector.load %arg6[%c0_214, %c0_215, %c80_216] : memref<1x8x256xf32, #tpu.memory_space<vmem>>, vector<1x8x16xf32>
    %214 = vector.shape_cast %213 : vector<1x8x16xf32> to vector<8x16xf32>
    %215 = vector.shape_cast %212 : vector<8x16xf32> to vector<1x8x16xf32>
    tpu.vector_store %arg6[%c0_214, %c0_215, %c80_216], %215 {strides = array<i32>} : memref<1x8x256xf32, #tpu.memory_space<vmem>>, vector<1x8x16xf32>,
    %c0_217 = arith.constant 0 : index
    %c108_218 = arith.constant 108 : index
    %216 = vector.load %arg13[%c0_217, %c108_218] : memref<8x288xf32, #tpu.memory_space<vmem>>, vector<8x16xf32>
    %c0_219 = arith.constant 0 : index
    %c0_220 = arith.constant 0 : index
    %c96_221 = arith.constant 96 : index
    %217 = vector.load %arg6[%c0_219, %c0_220, %c96_221] : memref<1x8x256xf32, #tpu.memory_space<vmem>>, vector<1x8x16xf32>
    %218 = vector.shape_cast %217 : vector<1x8x16xf32> to vector<8x16xf32>
    %219 = vector.shape_cast %216 : vector<8x16xf32> to vector<1x8x16xf32>
    tpu.vector_store %arg6[%c0_219, %c0_220, %c96_221], %219 {strides = array<i32>} : memref<1x8x256xf32, #tpu.memory_space<vmem>>, vector<1x8x16xf32>,
    %c0_222 = arith.constant 0 : index
    %c126_223 = arith.constant 126 : index
    %220 = vector.load %arg13[%c0_222, %c126_223] : memref<8x288xf32, #tpu.memory_space<vmem>>, vector<8x16xf32>
    %c0_224 = arith.constant 0 : index
    %c0_225 = arith.constant 0 : index
    %c112_226 = arith.constant 112 : index
    %221 = vector.load %arg6[%c0_224, %c0_225, %c112_226] : memref<1x8x256xf32, #tpu.memory_space<vmem>>, vector<1x8x16xf32>
    %222 = vector.shape_cast %221 : vector<1x8x16xf32> to vector<8x16xf32>
    %223 = vector.shape_cast %220 : vector<8x16xf32> to vector<1x8x16xf32>
    tpu.vector_store %arg6[%c0_224, %c0_225, %c112_226], %223 {strides = array<i32>} : memref<1x8x256xf32, #tpu.memory_space<vmem>>, vector<1x8x16xf32>,
    %c0_227 = arith.constant 0 : index
    %c144_228 = arith.constant 144 : index
    %224 = vector.load %arg13[%c0_227, %c144_228] : memref<8x288xf32, #tpu.memory_space<vmem>>, vector<8x16xf32>
    %c0_229 = arith.constant 0 : index
    %c0_230 = arith.constant 0 : index
    %c128_231 = arith.constant 128 : index
    %225 = vector.load %arg6[%c0_229, %c0_230, %c128_231] : memref<1x8x256xf32, #tpu.memory_space<vmem>>, vector<1x8x16xf32>
    %226 = vector.shape_cast %225 : vector<1x8x16xf32> to vector<8x16xf32>
    %227 = vector.shape_cast %224 : vector<8x16xf32> to vector<1x8x16xf32>
    tpu.vector_store %arg6[%c0_229, %c0_230, %c128_231], %227 {strides = array<i32>} : memref<1x8x256xf32, #tpu.memory_space<vmem>>, vector<1x8x16xf32>,
    %c0_232 = arith.constant 0 : index
    %c162_233 = arith.constant 162 : index
    %228 = vector.load %arg13[%c0_232, %c162_233] : memref<8x288xf32, #tpu.memory_space<vmem>>, vector<8x16xf32>
    %c0_234 = arith.constant 0 : index
    %c0_235 = arith.constant 0 : index
    %c144_236 = arith.constant 144 : index
    %229 = vector.load %arg6[%c0_234, %c0_235, %c144_236] : memref<1x8x256xf32, #tpu.memory_space<vmem>>, vector<1x8x16xf32>
    %230 = vector.shape_cast %229 : vector<1x8x16xf32> to vector<8x16xf32>
    %231 = vector.shape_cast %228 : vector<8x16xf32> to vector<1x8x16xf32>
    tpu.vector_store %arg6[%c0_234, %c0_235, %c144_236], %231 {strides = array<i32>} : memref<1x8x256xf32, #tpu.memory_space<vmem>>, vector<1x8x16xf32>,
    %c0_237 = arith.constant 0 : index
    %c180_238 = arith.constant 180 : index
    %232 = vector.load %arg13[%c0_237, %c180_238] : memref<8x288xf32, #tpu.memory_space<vmem>>, vector<8x16xf32>
    %c0_239 = arith.constant 0 : index
    %c0_240 = arith.constant 0 : index
    %c160_241 = arith.constant 160 : index
    %233 = vector.load %arg6[%c0_239, %c0_240, %c160_241] : memref<1x8x256xf32, #tpu.memory_space<vmem>>, vector<1x8x16xf32>
    %234 = vector.shape_cast %233 : vector<1x8x16xf32> to vector<8x16xf32>
    %235 = vector.shape_cast %232 : vector<8x16xf32> to vector<1x8x16xf32>
    tpu.vector_store %arg6[%c0_239, %c0_240, %c160_241], %235 {strides = array<i32>} : memref<1x8x256xf32, #tpu.memory_space<vmem>>, vector<1x8x16xf32>,
    %c0_242 = arith.constant 0 : index
    %c198_243 = arith.constant 198 : index
    %236 = vector.load %arg13[%c0_242, %c198_243] : memref<8x288xf32, #tpu.memory_space<vmem>>, vector<8x16xf32>
    %c0_244 = arith.constant 0 : index
    %c0_245 = arith.constant 0 : index
    %c176_246 = arith.constant 176 : index
    %237 = vector.load %arg6[%c0_244, %c0_245, %c176_246] : memref<1x8x256xf32, #tpu.memory_space<vmem>>, vector<1x8x16xf32>
    %238 = vector.shape_cast %237 : vector<1x8x16xf32> to vector<8x16xf32>
    %239 = vector.shape_cast %236 : vector<8x16xf32> to vector<1x8x16xf32>
    tpu.vector_store %arg6[%c0_244, %c0_245, %c176_246], %239 {strides = array<i32>} : memref<1x8x256xf32, #tpu.memory_space<vmem>>, vector<1x8x16xf32>,
    %c0_247 = arith.constant 0 : index
    %c216_248 = arith.constant 216 : index
    %240 = vector.load %arg13[%c0_247, %c216_248] : memref<8x288xf32, #tpu.memory_space<vmem>>, vector<8x16xf32>
    %c0_249 = arith.constant 0 : index
    %c0_250 = arith.constant 0 : index
    %c192_251 = arith.constant 192 : index
    %241 = vector.load %arg6[%c0_249, %c0_250, %c192_251] : memref<1x8x256xf32, #tpu.memory_space<vmem>>, vector<1x8x16xf32>
    %242 = vector.shape_cast %241 : vector<1x8x16xf32> to vector<8x16xf32>
    %243 = vector.shape_cast %240 : vector<8x16xf32> to vector<1x8x16xf32>
    tpu.vector_store %arg6[%c0_249, %c0_250, %c192_251], %243 {strides = array<i32>} : memref<1x8x256xf32, #tpu.memory_space<vmem>>, vector<1x8x16xf32>,
    %c0_252 = arith.constant 0 : index
    %c234_253 = arith.constant 234 : index
    %244 = vector.load %arg13[%c0_252, %c234_253] : memref<8x288xf32, #tpu.memory_space<vmem>>, vector<8x16xf32>
    %c0_254 = arith.constant 0 : index
    %c0_255 = arith.constant 0 : index
    %c208_256 = arith.constant 208 : index
    %245 = vector.load %arg6[%c0_254, %c0_255, %c208_256] : memref<1x8x256xf32, #tpu.memory_space<vmem>>, vector<1x8x16xf32>
    %246 = vector.shape_cast %245 : vector<1x8x16xf32> to vector<8x16xf32>
    %247 = vector.shape_cast %244 : vector<8x16xf32> to vector<1x8x16xf32>
    tpu.vector_store %arg6[%c0_254, %c0_255, %c208_256], %247 {strides = array<i32>} : memref<1x8x256xf32, #tpu.memory_space<vmem>>, vector<1x8x16xf32>,
    %c0_257 = arith.constant 0 : index
    %c252_258 = arith.constant 252 : index
    %248 = vector.load %arg13[%c0_257, %c252_258] : memref<8x288xf32, #tpu.memory_space<vmem>>, vector<8x16xf32>
    %c0_259 = arith.constant 0 : index
    %c0_260 = arith.constant 0 : index
    %c224_261 = arith.constant 224 : index
    %249 = vector.load %arg6[%c0_259, %c0_260, %c224_261] : memref<1x8x256xf32, #tpu.memory_space<vmem>>, vector<1x8x16xf32>
    %250 = vector.shape_cast %249 : vector<1x8x16xf32> to vector<8x16xf32>
    %251 = vector.shape_cast %248 : vector<8x16xf32> to vector<1x8x16xf32>
    tpu.vector_store %arg6[%c0_259, %c0_260, %c224_261], %251 {strides = array<i32>} : memref<1x8x256xf32, #tpu.memory_space<vmem>>, vector<1x8x16xf32>,
    %c0_262 = arith.constant 0 : index
    %c270_263 = arith.constant 270 : index
    %252 = vector.load %arg13[%c0_262, %c270_263] : memref<8x288xf32, #tpu.memory_space<vmem>>, vector<8x16xf32>
    %c0_264 = arith.constant 0 : index
    %c0_265 = arith.constant 0 : index
    %c240_266 = arith.constant 240 : index
    %253 = vector.load %arg6[%c0_264, %c0_265, %c240_266] : memref<1x8x256xf32, #tpu.memory_space<vmem>>, vector<1x8x16xf32>
    %254 = vector.shape_cast %253 : vector<1x8x16xf32> to vector<8x16xf32>
    %255 = vector.shape_cast %252 : vector<8x16xf32> to vector<1x8x16xf32>
    tpu.vector_store %arg6[%c0_264, %c0_265, %c240_266], %255 {strides = array<i32>} : memref<1x8x256xf32, #tpu.memory_space<vmem>>, vector<1x8x16xf32>,
    return
  }
  func.func @transform_0(%arg0: i32) -> (i32, i32, i32, i32) {
    %c0_i32 = arith.constant 0 : i32
    %c0_i32_0 = arith.constant 0 : i32
    %c0_i32_1 = arith.constant 0 : i32
    %c0_i32_2 = arith.constant 0 : i32
    return %arg0, %c0_i32, %c0_i32_0, %c0_i32_1 : i32, i32, i32, i32
  }
  func.func @transform_1(%arg0: i32) -> (i32, i32) {
    %c0_i32 = arith.constant 0 : i32
    %c0_i32_0 = arith.constant 0 : i32
    %c0_i32_1 = arith.constant 0 : i32
    return %c0_i32, %c0_i32_0 : i32, i32
  }
  func.func @transform_2(%arg0: i32) -> (i32, i32) {
    %c0_i32 = arith.constant 0 : i32
    %c0_i32_0 = arith.constant 0 : i32
    %c0_i32_1 = arith.constant 0 : i32
    return %c0_i32, %c0_i32_0 : i32, i32
  }
  func.func @transform_3(%arg0: i32) -> (i32, i32) {
    %c0_i32 = arith.constant 0 : i32
    %c0_i32_0 = arith.constant 0 : i32
    %c0_i32_1 = arith.constant 0 : i32
    return %c0_i32, %c0_i32_0 : i32, i32
  }
  func.func @transform_4(%arg0: i32) -> (i32, i32) {
    %c0_i32 = arith.constant 0 : i32
    %c0_i32_0 = arith.constant 0 : i32
    %c0_i32_1 = arith.constant 0 : i32
    return %c0_i32, %c0_i32_0 : i32, i32
  }
  func.func @transform_5(%arg0: i32) -> (i32, i32, i32) {
    %c0_i32 = arith.constant 0 : i32
    %c0_i32_0 = arith.constant 0 : i32
    %c0_i32_1 = arith.constant 0 : i32
    return %arg0, %c0_i32, %c0_i32_0 : i32, i32, i32
  }
  func.func @transform_6(%arg0: i32) -> (i32, i32, i32) {
    %c0_i32 = arith.constant 0 : i32
    %c0_i32_0 = arith.constant 0 : i32
    %c0_i32_1 = arith.constant 0 : i32
    return %arg0, %c0_i32, %c0_i32_0 : i32, i32, i32
  }
}

</mosaic_0001>

<llo_original>
// kernel: tpu_custom_call.1
$region0: #{tpu_custom_call.1}
  #allocation0 [shape = 'u32[]', space=smem, size = 0x4, offset = 0x4, fixed_abs, tag = 'smem constant byte address 0x4 - core index']
  #allocation1 [shape = 'u32[72,128]{1,0:T(1,128)}', space=vmem, size = 0x9000, scoped, tag = 'internal scratch']
  #allocation2 [shape = 'f32[4,342]{1,0:T(4,128)}', space=vmem, size = 0x1800, scoped, tag = 'scratch operand']
  #allocation3 [shape = 'f32[36,288]{1,0:T(8,128)}', space=vmem, size = 0xf000, scoped, tag = 'scratch operand']
  #allocation4 [shape = 'f32[8,288]{1,0:T(8,128)}', space=vmem, size = 0x3000, scoped, tag = 'scratch operand']
  #allocation5 [shape = 'f32[8,342]{1,0:T(8,128)}', space=vmem, size = 0x3000, scoped, tag = 'scratch operand']
  #allocation6 [shape = 'f32[72,288]{1,0:T(8,128)}', space=vmem, size = 0x1b000, scoped, tag = 'scratch operand']
  #allocation7 [shape = 'f32[8,288]{1,0:T(8,128)}', space=vmem, size = 0x3000, scoped, tag = 'scratch operand']
  %s0 = inlined_call_operand.hbm [shape: f32[2,4,16,16], index: 0, kind: input, shape index: {}]
  %s1 = inlined_call_operand.vmem [shape: f32[16,36], index: 1, kind: input, shape index: {}]
  %s2 = inlined_call_operand.vmem [shape: f32[16,1], index: 2, kind: input, shape index: {}]
  %s3 = inlined_call_operand.vmem [shape: f32[8,72], index: 3, kind: input, shape index: {}]
  %s4 = inlined_call_operand.vmem [shape: f32[8,1], index: 4, kind: input, shape index: {}]
  %s5 = inlined_call_operand.hbm [shape: f32[2,8,256], index: 5, kind: output, shape index: {0}]
  %s6 = inlined_call_operand.hbm [shape: f32[2,8,256], index: 6, kind: output, shape index: {1}]
  %7 = xla_tuple %s5, %s6
  %s8 = sld [smem:[#allocation0]]
  $region65: #{tpu_custom_call.1} parent=0
    _
  %s10 = ssub.s32 1, %s8
  %s11 = scalar_select 0, %s10, %s8
  $region1: #{tpu_custom_call.1} parent=0
    #allocation8 [shape = 'u8[65536]{0}', space=vmem, size = 0x10000, scoped, tag = 'input window, operand 0']
    #allocation9 [shape = 's32[2]{0}', space=sflag, size = 0x8, scoped, tag = 'scoped memory for tpu_custom_call.1']
    #allocation10 [shape = 's32[2]{0}', space=sflag, size = 0x8, scoped, tag = 'scoped memory for tpu_custom_call.1']
    #allocation11 [shape = 'u8[16384]{0}', space=vmem, size = 0x4000, scoped, tag = 'output window, operand 0']
    #allocation12 [shape = 'u8[16384]{0}', space=vmem, size = 0x4000, scoped, tag = 'output window, operand 1']
    #allocation13 [shape = 's32[2]{0}', space=sflag, size = 0x8, scoped, tag = 'scoped memory for tpu_custom_call.1']
    %12 = vsyncpa [#allocation9], 0
    %s13 = scalar_lea.sflag [#allocation9], 1
    %14 = vsyncpa %s13, 0
    %15 = vsyncpa [#allocation10], 0
    %s16 = scalar_lea.sflag [#allocation10], 1
    %17 = vsyncpa %s16, 0
    %18 = vsyncpa [#allocation13], 0
    %s19 = scalar_lea.sflag [#allocation13], 1
    %20 = vsyncpa %s19, 0
    loop: start=0, step=1, limit=4
    $region2: #{tpu_custom_call.1} parent=1 // loop_pre_header
      _
    $region3: #{tpu_custom_call.1} parent=1 // loop_header
      %s22 = sphi 0, %s26
      %p23 = scmp.ge.s32.totalorder %s22, 4
      %s32 = sphi 0, %s34
      %s35 = sphi 0, %s32
      %s36 = sphi 0, %s35
      %s52 = sphi 0, %s36
      %s56 = sphi 0, %s56
      %s58 = sphi 0, %s56
      %s59 = sphi 0, %s58
      %s73 = sphi 0, %s59
      %s77 = sphi 0, %s77
      %s79 = sphi 0, %s77
      %s80 = sphi 0, %s79
      %s94 = sphi 0, %s80
      %s98 = sphi 0, %s98
      %s100 = sphi 0, %s98
      %s101 = sphi 0, %s100
      %s115 = sphi 0, %s101
      %s119 = sphi 0, %s119
      %s121 = sphi 0, %s119
      %s122 = sphi 0, %s121
      %s136 = sphi 0, %s122
      %s142 = sphi 0, %s144
      %s145 = sphi 0, %s142
      %s146 = sphi 0, %s145
      %s162 = sphi 0, %s146
      %s168 = sphi 0, %s170
      %s171 = sphi 0, %s168
      %s172 = sphi 0, %s171
      %s188 = sphi 0, %s172
    $region4: #{tpu_custom_call.1} parent=1 // loop_header_branch
      %25 = sbr.rel (%p23) target = $region8
    $region5: #{tpu_custom_call.1} parent=1 // loop_body
      %s27 = ssub.s32 %s22, 1
      %s28 = ssub.s32 %s22, 2
      %s29 = sadd.s32 %s22, 1
      %s30 = ssub.s32 %s22, %s29
      %p31 = scmp.eq.s32.totalorder %s30, 0
      %s33 = sadd.s32 %s32, 1
      %s34 = scalar_select %p31, %s32, %s33
      %p37 = pneg %p31
      %p38 = scmp.eq.s32.totalorder %s22, 1
      %p39 = por %p37, %p38
      %p40 = scmp.ne.s32.totalorder %s32, %s35
      %p41 = scmp.eq.s32.totalorder %s22, 0
      %p42 = por %p40, %p41
      %p43 = scmp.ne.s32.totalorder %s32, %s35
      %p44 = scmp.eq.s32.totalorder %s27, 1
      %p45 = por %p43, %p44
      %p46 = scmp.ne.s32.totalorder %s35, %s36
      %p47 = scmp.eq.s32.totalorder %s27, 0
      %p48 = por %p46, %p47
      %p49 = scmp.ne.s32.totalorder %s35, %s36
      %p50 = scmp.eq.s32.totalorder %s28, 1
      %p51 = por %p49, %p50
      %p53 = scmp.ne.s32.totalorder %s36, %s52
      %p54 = scmp.eq.s32.totalorder %s28, 0
      %p55 = por %p53, %p54
      %s57 = sadd.s32 %s56, 1
      %p60 = scmp.eq.s32.totalorder %s22, 1
      %p61 = scmp.ne.s32.totalorder %s56, %s58
      %p62 = scmp.eq.s32.totalorder %s22, 0
      %p63 = por %p61, %p62
      %p64 = scmp.ne.s32.totalorder %s56, %s58
      %p65 = scmp.eq.s32.totalorder %s27, 1
      %p66 = por %p64, %p65
      %p67 = scmp.ne.s32.totalorder %s58, %s59
      %p68 = scmp.eq.s32.totalorder %s27, 0
      %p69 = por %p67, %p68
      %p70 = scmp.ne.s32.totalorder %s58, %s59
      %p71 = scmp.eq.s32.totalorder %s28, 1
      %p72 = por %p70, %p71
      %p74 = scmp.ne.s32.totalorder %s59, %s73
      %p75 = scmp.eq.s32.totalorder %s28, 0
      %p76 = por %p74, %p75
      %s78 = sadd.s32 %s77, 1
      %p81 = scmp.eq.s32.totalorder %s22, 1
      %p82 = scmp.ne.s32.totalorder %s77, %s79
      %p83 = scmp.eq.s32.totalorder %s22, 0
      %p84 = por %p82, %p83
      %p85 = scmp.ne.s32.totalorder %s77, %s79
      %p86 = scmp.eq.s32.totalorder %s27, 1
      %p87 = por %p85, %p86
      %p88 = scmp.ne.s32.totalorder %s79, %s80
      %p89 = scmp.eq.s32.totalorder %s27, 0
      %p90 = por %p88, %p89
      %p91 = scmp.ne.s32.totalorder %s79, %s80
      %p92 = scmp.eq.s32.totalorder %s28, 1
      %p93 = por %p91, %p92
      %p95 = scmp.ne.s32.totalorder %s80, %s94
      %p96 = scmp.eq.s32.totalorder %s28, 0
      %p97 = por %p95, %p96
      %s99 = sadd.s32 %s98, 1
      %p102 = scmp.eq.s32.totalorder %s22, 1
      %p103 = scmp.ne.s32.totalorder %s98, %s100
      %p104 = scmp.eq.s32.totalorder %s22, 0
      %p105 = por %p103, %p104
      %p106 = scmp.ne.s32.totalorder %s98, %s100
      %p107 = scmp.eq.s32.totalorder %s27, 1
      %p108 = por %p106, %p107
      %p109 = scmp.ne.s32.totalorder %s100, %s101
      %p110 = scmp.eq.s32.totalorder %s27, 0
      %p111 = por %p109, %p110
      %p112 = scmp.ne.s32.totalorder %s100, %s101
      %p113 = scmp.eq.s32.totalorder %s28, 1
      %p114 = por %p112, %p113
      %p116 = scmp.ne.s32.totalorder %s101, %s115
      %p117 = scmp.eq.s32.totalorder %s28, 0
      %p118 = por %p116, %p117
      %s120 = sadd.s32 %s119, 1
      %p123 = scmp.eq.s32.totalorder %s22, 1
      %p124 = scmp.ne.s32.totalorder %s119, %s121
      %p125 = scmp.eq.s32.totalorder %s22, 0
      %p126 = por %p124, %p125
      %p127 = scmp.ne.s32.totalorder %s119, %s121
      %p128 = scmp.eq.s32.totalorder %s27, 1
      %p129 = por %p127, %p128
      %p130 = scmp.ne.s32.totalorder %s121, %s122
      %p131 = scmp.eq.s32.totalorder %s27, 0
      %p132 = por %p130, %p131
      %p133 = scmp.ne.s32.totalorder %s121, %s122
      %p134 = scmp.eq.s32.totalorder %s28, 1
      %p135 = por %p133, %p134
      %p137 = scmp.ne.s32.totalorder %s122, %s136
      %p138 = scmp.eq.s32.totalorder %s28, 0
      %p139 = por %p137, %p138
      %s140 = ssub.s32 %s22, %s29
      %p141 = scmp.eq.s32.totalorder %s140, 0
      %s143 = sadd.s32 %s142, 1
      %s144 = scalar_select %p141, %s142, %s143
      %p147 = pneg %p141
      %p148 = scmp.eq.s32.totalorder %s22, 1
      %p149 = por %p147, %p148
      %p150 = scmp.ne.s32.totalorder %s142, %s145
      %p151 = scmp.eq.s32.totalorder %s22, 0
      %p152 = por %p150, %p151
      %p153 = scmp.ne.s32.totalorder %s142, %s145
      %p154 = scmp.eq.s32.totalorder %s27, 1
      %p155 = por %p153, %p154
      %p156 = scmp.ne.s32.totalorder %s145, %s146
      %p157 = scmp.eq.s32.totalorder %s27, 0
      %p158 = por %p156, %p157
      %p159 = scmp.ne.s32.totalorder %s145, %s146
      %p160 = scmp.eq.s32.totalorder %s28, 1
      %p161 = por %p159, %p160
      %p163 = scmp.ne.s32.totalorder %s146, %s162
      %p164 = scmp.eq.s32.totalorder %s28, 0
      %p165 = por %p163, %p164
      %s166 = ssub.s32 %s22, %s29
      %p167 = scmp.eq.s32.totalorder %s166, 0
      %s169 = sadd.s32 %s168, 1
      %s170 = scalar_select %p167, %s168, %s169
      %p173 = pneg %p167
      %p174 = scmp.eq.s32.totalorder %s22, 1
      %p175 = por %p173, %p174
      %p176 = scmp.ne.s32.totalorder %s168, %s171
      %p177 = scmp.eq.s32.totalorder %s22, 0
      %p178 = por %p176, %p177
      %p179 = scmp.ne.s32.totalorder %s168, %s171
      %p180 = scmp.eq.s32.totalorder %s27, 1
      %p181 = por %p179, %p180
      %p182 = scmp.ne.s32.totalorder %s171, %s172
      %p183 = scmp.eq.s32.totalorder %s27, 0
      %p184 = por %p182, %p183
      %p185 = scmp.ne.s32.totalorder %s171, %s172
      %p186 = scmp.eq.s32.totalorder %s28, 1
      %p187 = por %p185, %p186
      %p189 = scmp.ne.s32.totalorder %s172, %s188
      %p190 = scmp.eq.s32.totalorder %s28, 0
      %p191 = por %p189, %p190
      %p192 = scmp.le.s32.totalorder 1, %s22
      %p193 = scmp.lt.s32.totalorder %s22, 3
      %p194 = pnand %p192, %p193
      %p195 = pneg %p194
      // Predicated region
      $region9: #{tpu_custom_call.1} parent=5 // pred_check
        _
      $region10: #{tpu_custom_call.1} parent=5 // pred_check_branch
        %197 = sbr.rel (%p194) target = $region12
      $region11: #{tpu_custom_call.1} parent=5 // pred_region
        %s198 = ssub.s32 %s22, 1
        // Predicated region
        $region13: #{tpu_custom_call.1} parent=11 // pred_check
          %p199 = pneg %p69
        $region14: #{tpu_custom_call.1} parent=11 // pred_check_branch
          %201 = sbr.rel (%p199) target = $region16
        $region15: #{tpu_custom_call.1} parent=11 // pred_region
          _
        $region16: #{tpu_custom_call.1} parent=11 // pred_fallthru
          _
        // Predicated region
        $region17: #{tpu_custom_call.1} parent=11 // pred_check
          %p202 = pneg %p90
        $region18: #{tpu_custom_call.1} parent=11 // pred_check_branch
          %204 = sbr.rel (%p202) target = $region20
        $region19: #{tpu_custom_call.1} parent=11 // pred_region
          _
        $region20: #{tpu_custom_call.1} parent=11 // pred_fallthru
          _
        // Predicated region
        $region21: #{tpu_custom_call.1} parent=11 // pred_check
          %p205 = pneg %p111
        $region22: #{tpu_custom_call.1} parent=11 // pred_check_branch
          %207 = sbr.rel (%p205) target = $region24
        $region23: #{tpu_custom_call.1} parent=11 // pred_region
          _
        $region24: #{tpu_custom_call.1} parent=11 // pred_fallthru
          _
        // Predicated region
        $region25: #{tpu_custom_call.1} parent=11 // pred_check
          %p208 = pneg %p132
        $region26: #{tpu_custom_call.1} parent=11 // pred_check_branch
          %210 = sbr.rel (%p208) target = $region28
        $region27: #{tpu_custom_call.1} parent=11 // pred_region
          _
        $region28: #{tpu_custom_call.1} parent=11 // pred_fallthru
          _
      $region12: #{tpu_custom_call.1} parent=5 // pred_fallthru
        _
      %p211 = scmp.lt.s32.totalorder %s22, 2
      // Predicated region
      $region29: #{tpu_custom_call.1} parent=5 // pred_check
        %p212 = pneg %p211
      $region30: #{tpu_custom_call.1} parent=5 // pred_check_branch
        %214 = sbr.rel (%p212) target = $region32
      $region31: #{tpu_custom_call.1} parent=5 // pred_region
        // Predicated region
        $region33: #{tpu_custom_call.1} parent=31 // pred_check
          %p215 = pneg %p42
        $region34: #{tpu_custom_call.1} parent=31 // pred_check_branch
          %217 = sbr.rel (%p215) target = $region36
        $region35: #{tpu_custom_call.1} parent=31 // pred_region
          %s218 = sand.u32 %s32, 1
          %s219 = scalar_lea.sflag [#allocation9], %s218
          %s220 = sand.u32 %s32, 1
          %s221 = smul.addr %s220, 64
          %s222 = scalar_lea.vmem [#allocation8], %s221
          %224 = vsyncadd %s219, 0
          %s225 = smul.addr %s22, 8
          %s226 = smul.addr %s225, 8
          %s227 = scalar_lea.hbm %s0, %s226
          %s228 = sshll.u32 %s227, 4
          %s229 = int_to_ptr.hbm [resolvable:$true] %s228
          %s230 = sshll.u32 %s222, 4
          %s231 = int_to_ptr.vmem [resolvable:$true] %s230
          %236 = dma.hbm_to_vmem [thread:$0]  %s229, 1024, %s231, %s219, 128, 128, 8
        $region36: #{tpu_custom_call.1} parent=31 // pred_fallthru
          _
      $region32: #{tpu_custom_call.1} parent=5 // pred_fallthru
        _
      %p237 = scmp.le.s32.totalorder 1, %s22
      %p238 = scmp.lt.s32.totalorder %s22, 3
      %p239 = pnand %p237, %p238
      %p240 = pneg %p239
      // Predicated region
      $region37: #{tpu_custom_call.1} parent=5 // pred_check
        _
      $region38: #{tpu_custom_call.1} parent=5 // pred_check_branch
        %242 = sbr.rel (%p239) target = $region40
      $region39: #{tpu_custom_call.1} parent=5 // pred_region
        %s243 = ssub.s32 %s22, 1
        %s244 = sand.u32 %s35, 1
        %s245 = scalar_lea.sflag [#allocation9], %s244
        %s246 = sand.u32 %s35, 1
        %s247 = smul.addr %s246, 64
        %s248 = scalar_lea.vmem [#allocation8], %s247
        // Predicated region
        $region41: #{tpu_custom_call.1} parent=39 // pred_check
          %p249 = pneg %p48
        $region42: #{tpu_custom_call.1} parent=39 // pred_check_branch
          %251 = sbr.rel (%p249) target = $region44
        $region43: #{tpu_custom_call.1} parent=39 // pred_region
          %253 = dma.done %s245, 1024
        $region44: #{tpu_custom_call.1} parent=39 // pred_fallthru
          _
        %s254 = sand.u32 %s35, 1
        %s255 = scalar_lea.sflag [#allocation9], %s254
        %s256 = sand.u32 %s35, 1
        %s257 = smul.addr %s256, 64
        %s258 = scalar_lea.vmem [#allocation8], %s257
        %p259 = pneg %p48
        %p260 = pneg %p45
        %p261 = pneg %p69
        %p262 = pneg %p66
        %p263 = pneg %p90
        %p264 = pneg %p87
        %p265 = pneg %p111
        %p266 = pneg %p108
        %p267 = pneg %p132
        %p268 = pneg %p129
        %p269 = pneg %p158
        %p270 = pneg %p155
        %s271 = sand.u32 %s145, 1
        %s272 = scalar_lea.sflag [#allocation10], %s271
        %s273 = sand.u32 %s145, 1
        %s274 = smul.addr %s273, 16
        %s275 = scalar_lea.vmem [#allocation11], %s274
        %p276 = pneg %p184
        %p277 = pneg %p181
        %s278 = sand.u32 %s171, 1
        %s279 = scalar_lea.sflag [#allocation13], %s278
        %s280 = sand.u32 %s171, 1
        %s281 = smul.addr %s280, 16
        %s282 = scalar_lea.vmem [#allocation12], %s281
        %283 = vst [vmem:[#allocation2] sm:$0xff] 0.0
        %vm284 = vcmask 699392
        %285 = vst.msk [vmem:[#allocation2 + $0x8] sm:$0xf] %vm284, 0.0
        %v286 = vld [vmem:[%s248] sm:$0xff]
        %v287 = vld [vmem:[%s248 + $0x8] sm:$0xff]
        %v288 = vld [vmem:[%s248 + $0x10] sm:$0xff]
        %v289 = vld [vmem:[%s248 + $0x18] sm:$0xff]
        %v290 = vld [vmem:[%s248 + $0x20] sm:$0xff]
        %v291 = vld [vmem:[%s248 + $0x28] sm:$0xff]
        %v292 = vld [vmem:[%s248 + $0x30] sm:$0xff]
        %v293 = vld [vmem:[%s248 + $0x38] sm:$0xff]
        %v298 = vrot.slane %v288, 7
        %vm299 = vcmask 1041409
        %v300 = vsel %vm299, %v298, %v286
        %vm301 = vcmask 1045509
        %v302 = vsel %vm301, %v298, %v300
        %v303 = vrot.slane %v290, 6
        %vm304 = vcmask 1042434
        %v305 = vsel %vm304, %v303, %v302
        %vm306 = vcmask 1046534
        %v307 = vsel %vm306, %v303, %v305
        %v308 = vrot.slane %v292, 5
        %vm309 = vcmask 1043459
        %v310 = vsel %vm309, %v308, %v307
        %vm311 = vcmask 1047559
        %v312 = vsel %vm311, %v308, %v310
        %313 = vrot.lane.b32.xlu0 %v312, 19
        %v314 = vpop.permute.xlu0 %313
        %vm316 = vcmask 281752
        %317 = vst.msk [vmem:[#allocation2] sm:$0xf] %vm316, %v314
        %v318 = vrot.slane %v286, 1
        %v319 = vsel %vm299, %v288, %v318
        %v320 = vsel %vm301, %v288, %v319
        %v321 = vrot.slane %v290, 7
        %v322 = vsel %vm304, %v321, %v320
        %v323 = vsel %vm306, %v321, %v322
        %v324 = vrot.slane %v292, 6
        %v325 = vsel %vm309, %v324, %v323
        %v326 = vsel %vm311, %v324, %v325
        %327 = vrot.lane.b32.xlu0 %v326, 37
        %v328 = vpop.permute.xlu0 %327
        %vm330 = vcmask 429352
        %331 = vst.msk [vmem:[#allocation2] sm:$0xf] %vm330, %v328
        %v332 = vrot.slane %v286, 2
        %v333 = vrot.slane %v288, 1
        %v334 = vsel %vm299, %v333, %v332
        %v335 = vsel %vm301, %v333, %v334
        %v336 = vsel %vm304, %v290, %v335
        %v337 = vsel %vm306, %v290, %v336
        %v338 = vrot.slane %v292, 7
        %v339 = vsel %vm309, %v338, %v337
        %v340 = vsel %vm311, %v338, %v339
        %341 = vrot.lane.b32.xlu0 %v340, 55
        %v342 = vpop.permute.xlu0 %341
        %vm344 = vcmask 576952
        %345 = vst.msk [vmem:[#allocation2] sm:$0xf] %vm344, %v342
        %v346 = vrot.slane %v286, 3
        %v347 = vrot.slane %v288, 2
        %v348 = vsel %vm299, %v347, %v346
        %v349 = vsel %vm301, %v347, %v348
        %v350 = vrot.slane %v290, 1
        %v351 = vsel %vm304, %v350, %v349
        %v352 = vsel %vm306, %v350, %v351
        %v353 = vsel %vm309, %v292, %v352
        %v354 = vsel %vm311, %v292, %v353
        %355 = vrot.lane.b32.xlu0 %v354, 73
        %v356 = vpop.permute.xlu0 %355
        %vm358 = vcmask 724552
        %359 = vst.msk [vmem:[#allocation2] sm:$0xf] %vm358, %v356
        %360 = vst.sshfl [vmem:[#allocation1] sm:$0xff pattern:$0x75316420] %v286
        %s361 = scalar_lea.vmem [#allocation1], 1
        %v362 = vld [vmem:[%s361] ss:$2 sm:$0xff]
        %363 = vst.sshfl [vmem:[#allocation1 + $0x10] sm:$0xff pattern:$0x75316420] %v288
        %s364 = scalar_lea.vmem [#allocation1], 17
        %v365 = vld [vmem:[%s364] ss:$2 sm:$0xff]
        %366 = vst.sshfl [vmem:[#allocation1 + $0x20] sm:$0xff pattern:$0x75316420] %v290
        %s367 = scalar_lea.vmem [#allocation1], 33
        %v368 = vld [vmem:[%s367] ss:$2 sm:$0xff]
        %369 = vst.sshfl [vmem:[#allocation1 + $0x30] sm:$0xff pattern:$0x75316420] %v292
        %s370 = scalar_lea.vmem [#allocation1], 49
        %v371 = vld [vmem:[%s370] ss:$2 sm:$0xff]
        %v372 = vrot.slane %v365, 7
        %v373 = vsel %vm299, %v372, %v362
        %v374 = vsel %vm301, %v372, %v373
        %v375 = vrot.slane %v368, 6
        %v376 = vsel %vm304, %v375, %v374
        %v377 = vsel %vm306, %v375, %v376
        %v378 = vrot.slane %v371, 5
        %v379 = vsel %vm309, %v378, %v377
        %v380 = vsel %vm311, %v378, %v379
        %381 = vrot.lane.b32.xlu0 %v380, 91
        %v382 = vpop.permute.xlu0 %381
        %vm384 = vcmask 872152
        %385 = vst.msk [vmem:[#allocation2] sm:$0xf] %vm384, %v382
        %386 = vst.sshfl [vmem:[#allocation1] sm:$0xff pattern:$0x75316420] %v286
        %s387 = scalar_lea.vmem [#allocation1], 1
        %v388 = vld [vmem:[%s387] ss:$2 sm:$0xff]
        %389 = vst.sshfl [vmem:[#allocation1 + $0x10] sm:$0xff pattern:$0x75316420] %v288
        %s390 = scalar_lea.vmem [#allocation1], 17
        %v391 = vld [vmem:[%s390] ss:$2 sm:$0xff]
        %392 = vst.sshfl [vmem:[#allocation1 + $0x20] sm:$0xff pattern:$0x75316420] %v290
        %s393 = scalar_lea.vmem [#allocation1], 33
        %v394 = vld [vmem:[%s393] ss:$2 sm:$0xff]
        %395 = vst.sshfl [vmem:[#allocation1 + $0x30] sm:$0xff pattern:$0x75316420] %v292
        %s396 = scalar_lea.vmem [#allocation1], 49
        %v397 = vld [vmem:[%s396] ss:$2 sm:$0xff]
        %v398 = vrot.slane %v388, 1
        %v399 = vsel %vm299, %v391, %v398
        %v400 = vsel %vm301, %v391, %v399
        %v401 = vrot.slane %v394, 7
        %v402 = vsel %vm304, %v401, %v400
        %v403 = vsel %vm306, %v401, %v402
        %v404 = vrot.slane %v397, 6
        %v405 = vsel %vm309, %v404, %v403
        %v406 = vsel %vm311, %v404, %v405
        %407 = vrot.lane.b32.xlu0 %v406, 109
        %v408 = vpop.permute.xlu0 %407
        %vm410 = vcmask 1019752
        %411 = vst.msk [vmem:[#allocation2] sm:$0xf] %vm410, %v408
        %412 = vst.sshfl [vmem:[#allocation1] sm:$0xff pattern:$0x75316420] %v286
        %s413 = scalar_lea.vmem [#allocation1], 1
        %v414 = vld [vmem:[%s413] ss:$2 sm:$0xff]
        %415 = vst.sshfl [vmem:[#allocation1 + $0x10] sm:$0xff pattern:$0x75316420] %v288
        %s416 = scalar_lea.vmem [#allocation1], 17
        %v417 = vld [vmem:[%s416] ss:$2 sm:$0xff]
        %418 = vst.sshfl [vmem:[#allocation1 + $0x20] sm:$0xff pattern:$0x75316420] %v290
        %s419 = scalar_lea.vmem [#allocation1], 33
        %v420 = vld [vmem:[%s419] ss:$2 sm:$0xff]
        %421 = vst.sshfl [vmem:[#allocation1 + $0x30] sm:$0xff pattern:$0x75316420] %v292
        %s422 = scalar_lea.vmem [#allocation1], 49
        %v423 = vld [vmem:[%s422] ss:$2 sm:$0xff]
        %v424 = vrot.slane %v414, 2
        %v425 = vrot.slane %v417, 1
        %v426 = vsel %vm299, %v425, %v424
        %v427 = vsel %vm301, %v425, %v426
        %v428 = vsel %vm304, %v420, %v427
        %v429 = vsel %vm306, %v420, %v428
        %v430 = vrot.slane %v423, 7
        %v431 = vsel %vm309, %v430, %v429
        %v432 = vsel %vm311, %v430, %v431
        %433 = vrot.lane.b32.xlu0 %v432, 127
        %v434 = vpop.permute.xlu0 %433
        %v435 = vrot.slane %v434, 4
        %vm436 = vcmask 1039360
        %v437 = vsel %vm436, %v435, %v434
        %vm439 = vcmask 1044472
        %vm440 = vcmask 121860
        %vm441 = vmor %vm440, %vm439
        %442 = vst.msk [vmem:[#allocation2] sm:$0xff] %vm441, %v437
        %443 = vst.sshfl [vmem:[#allocation1] sm:$0xff pattern:$0x75316420] %v286
        %s444 = scalar_lea.vmem [#allocation1], 1
        %v445 = vld [vmem:[%s444] ss:$2 sm:$0xff]
        %446 = vst.sshfl [vmem:[#allocation1 + $0x10] sm:$0xff pattern:$0x75316420] %v288
        %s447 = scalar_lea.vmem [#allocation1], 17
        %v448 = vld [vmem:[%s447] ss:$2 sm:$0xff]
        %449 = vst.sshfl [vmem:[#allocation1 + $0x20] sm:$0xff pattern:$0x75316420] %v290
        %s450 = scalar_lea.vmem [#allocation1], 33
        %v451 = vld [vmem:[%s450] ss:$2 sm:$0xff]
        %452 = vst.sshfl [vmem:[#allocation1 + $0x30] sm:$0xff pattern:$0x75316420] %v292
        %s453 = scalar_lea.vmem [#allocation1], 49
        %v454 = vld [vmem:[%s453] ss:$2 sm:$0xff]
        %v455 = vrot.slane %v445, 3
        %v456 = vrot.slane %v448, 2
        %v457 = vsel %vm299, %v456, %v455
        %v458 = vsel %vm301, %v456, %v457
        %v459 = vrot.slane %v451, 1
        %v460 = vsel %vm304, %v459, %v458
        %v461 = vsel %vm306, %v459, %v460
        %v462 = vsel %vm309, %v454, %v461
        %v463 = vsel %vm311, %v454, %v462
        %464 = vrot.lane.b32.xlu0 %v463, 17
        %v465 = vpop.permute.xlu0 %464
        %vm467 = vcmask 265352
        %468 = vst.msk [vmem:[#allocation2 + $0x4] sm:$0xf] %vm467, %v465
        %v473 = vrot.slane %v289, 7
        %v474 = vsel %vm299, %v473, %v287
        %v475 = vsel %vm301, %v473, %v474
        %v476 = vrot.slane %v291, 6
        %v477 = vsel %vm304, %v476, %v475
        %v478 = vsel %vm306, %v476, %v477
        %v479 = vrot.slane %v293, 5
        %v480 = vsel %vm309, %v479, %v478
        %v481 = vsel %vm311, %v479, %v480
        %482 = vrot.lane.b32.xlu0 %v481, 35
        %v483 = vpop.permute.xlu0 %482
        %vm485 = vcmask 412952
        %486 = vst.msk [vmem:[#allocation2 + $0x4] sm:$0xf] %vm485, %v483
        %v487 = vrot.slane %v287, 1
        %v488 = vsel %vm299, %v289, %v487
        %v489 = vsel %vm301, %v289, %v488
        %v490 = vrot.slane %v291, 7
        %v491 = vsel %vm304, %v490, %v489
        %v492 = vsel %vm306, %v490, %v491
        %v493 = vrot.slane %v293, 6
        %v494 = vsel %vm309, %v493, %v492
        %v495 = vsel %vm311, %v493, %v494
        %496 = vrot.lane.b32.xlu0 %v495, 53
        %v497 = vpop.permute.xlu0 %496
        %vm499 = vcmask 560552
        %500 = vst.msk [vmem:[#allocation2 + $0x4] sm:$0xf] %vm499, %v497
        %v501 = vrot.slane %v287, 2
        %v502 = vrot.slane %v289, 1
        %v503 = vsel %vm299, %v502, %v501
        %v504 = vsel %vm301, %v502, %v503
        %v505 = vsel %vm304, %v291, %v504
        %v506 = vsel %vm306, %v291, %v505
        %v507 = vrot.slane %v293, 7
        %v508 = vsel %vm309, %v507, %v506
        %v509 = vsel %vm311, %v507, %v508
        %510 = vrot.lane.b32.xlu0 %v509, 71
        %v511 = vpop.permute.xlu0 %510
        %vm513 = vcmask 708152
        %514 = vst.msk [vmem:[#allocation2 + $0x4] sm:$0xf] %vm513, %v511
        %v515 = vrot.slane %v287, 3
        %v516 = vrot.slane %v289, 2
        %v517 = vsel %vm299, %v516, %v515
        %v518 = vsel %vm301, %v516, %v517
        %v519 = vrot.slane %v291, 1
        %v520 = vsel %vm304, %v519, %v518
        %v521 = vsel %vm306, %v519, %v520
        %v522 = vsel %vm309, %v293, %v521
        %v523 = vsel %vm311, %v293, %v522
        %524 = vrot.lane.b32.xlu0 %v523, 89
        %v525 = vpop.permute.xlu0 %524
        %vm527 = vcmask 855752
        %528 = vst.msk [vmem:[#allocation2 + $0x4] sm:$0xf] %vm527, %v525
        %529 = vst.sshfl [vmem:[#allocation1] sm:$0xff pattern:$0x75316420] %v287
        %s530 = scalar_lea.vmem [#allocation1], 1
        %v531 = vld [vmem:[%s530] ss:$2 sm:$0xff]
        %532 = vst.sshfl [vmem:[#allocation1 + $0x10] sm:$0xff pattern:$0x75316420] %v289
        %s533 = scalar_lea.vmem [#allocation1], 17
        %v534 = vld [vmem:[%s533] ss:$2 sm:$0xff]
        %535 = vst.sshfl [vmem:[#allocation1 + $0x20] sm:$0xff pattern:$0x75316420] %v291
        %s536 = scalar_lea.vmem [#allocation1], 33
        %v537 = vld [vmem:[%s536] ss:$2 sm:$0xff]
        %538 = vst.sshfl [vmem:[#allocation1 + $0x30] sm:$0xff pattern:$0x75316420] %v293
        %s539 = scalar_lea.vmem [#allocation1], 49
        %v540 = vld [vmem:[%s539] ss:$2 sm:$0xff]
        %v541 = vrot.slane %v534, 7
        %v542 = vsel %vm299, %v541, %v531
        %v543 = vsel %vm301, %v541, %v542
        %v544 = vrot.slane %v537, 6
        %v545 = vsel %vm304, %v544, %v543
        %v546 = vsel %vm306, %v544, %v545
        %v547 = vrot.slane %v540, 5
        %v548 = vsel %vm309, %v547, %v546
        %v549 = vsel %vm311, %v547, %v548
        %550 = vrot.lane.b32.xlu0 %v549, 107
        %v551 = vpop.permute.xlu0 %550
        %vm553 = vcmask 1003352
        %554 = vst.msk [vmem:[#allocation2 + $0x4] sm:$0xf] %vm553, %v551
        %555 = vst.sshfl [vmem:[#allocation1] sm:$0xff pattern:$0x75316420] %v287
        %s556 = scalar_lea.vmem [#allocation1], 1
        %v557 = vld [vmem:[%s556] ss:$2 sm:$0xff]
        %558 = vst.sshfl [vmem:[#allocation1 + $0x10] sm:$0xff pattern:$0x75316420] %v289
        %s559 = scalar_lea.vmem [#allocation1], 17
        %v560 = vld [vmem:[%s559] ss:$2 sm:$0xff]
        %561 = vst.sshfl [vmem:[#allocation1 + $0x20] sm:$0xff pattern:$0x75316420] %v291
        %s562 = scalar_lea.vmem [#allocation1], 33
        %v563 = vld [vmem:[%s562] ss:$2 sm:$0xff]
        %564 = vst.sshfl [vmem:[#allocation1 + $0x30] sm:$0xff pattern:$0x75316420] %v293
        %s565 = scalar_lea.vmem [#allocation1], 49
        %v566 = vld [vmem:[%s565] ss:$2 sm:$0xff]
        %v567 = vrot.slane %v557, 1
        %v568 = vsel %vm299, %v560, %v567
        %v569 = vsel %vm301, %v560, %v568
        %v570 = vrot.slane %v563, 7
        %v571 = vsel %vm304, %v570, %v569
        %v572 = vsel %vm306, %v570, %v571
        %v573 = vrot.slane %v566, 6
        %v574 = vsel %vm309, %v573, %v572
        %v575 = vsel %vm311, %v573, %v574
        %576 = vrot.lane.b32.xlu0 %v575, 125
        %v577 = vpop.permute.xlu0 %576
        %v578 = vrot.slane %v577, 4
        %vm579 = vcmask 1022976
        %v580 = vsel %vm579, %v578, %v577
        %vm582 = vcmask 1044456
        %vm583 = vcmask 105476
        %vm584 = vmor %vm583, %vm582
        %585 = vst.msk [vmem:[#allocation2 + $0x4] sm:$0xff] %vm584, %v580
        %586 = vst.sshfl [vmem:[#allocation1] sm:$0xff pattern:$0x75316420] %v287
        %s587 = scalar_lea.vmem [#allocation1], 1
        %v588 = vld [vmem:[%s587] ss:$2 sm:$0xff]
        %589 = vst.sshfl [vmem:[#allocation1 + $0x10] sm:$0xff pattern:$0x75316420] %v289
        %s590 = scalar_lea.vmem [#allocation1], 17
        %v591 = vld [vmem:[%s590] ss:$2 sm:$0xff]
        %592 = vst.sshfl [vmem:[#allocation1 + $0x20] sm:$0xff pattern:$0x75316420] %v291
        %s593 = scalar_lea.vmem [#allocation1], 33
        %v594 = vld [vmem:[%s593] ss:$2 sm:$0xff]
        %595 = vst.sshfl [vmem:[#allocation1 + $0x30] sm:$0xff pattern:$0x75316420] %v293
        %s596 = scalar_lea.vmem [#allocation1], 49
        %v597 = vld [vmem:[%s596] ss:$2 sm:$0xff]
        %v598 = vrot.slane %v588, 2
        %v599 = vrot.slane %v591, 1
        %v600 = vsel %vm299, %v599, %v598
        %v601 = vsel %vm301, %v599, %v600
        %v602 = vsel %vm304, %v594, %v601
        %v603 = vsel %vm306, %v594, %v602
        %v604 = vrot.slane %v597, 7
        %v605 = vsel %vm309, %v604, %v603
        %v606 = vsel %vm311, %v604, %v605
        %607 = vrot.lane.b32.xlu0 %v606, 15
        %v608 = vpop.permute.xlu0 %607
        %vm610 = vcmask 248952
        %611 = vst.msk [vmem:[#allocation2 + $0x8] sm:$0xf] %vm610, %v608
        %612 = vst.sshfl [vmem:[#allocation1] sm:$0xff pattern:$0x75316420] %v287
        %s613 = scalar_lea.vmem [#allocation1], 1
        %v614 = vld [vmem:[%s613] ss:$2 sm:$0xff]
        %615 = vst.sshfl [vmem:[#allocation1 + $0x10] sm:$0xff pattern:$0x75316420] %v289
        %s616 = scalar_lea.vmem [#allocation1], 17
        %v617 = vld [vmem:[%s616] ss:$2 sm:$0xff]
        %618 = vst.sshfl [vmem:[#allocation1 + $0x20] sm:$0xff pattern:$0x75316420] %v291
        %s619 = scalar_lea.vmem [#allocation1], 33
        %v620 = vld [vmem:[%s619] ss:$2 sm:$0xff]
        %621 = vst.sshfl [vmem:[#allocation1 + $0x30] sm:$0xff pattern:$0x75316420] %v293
        %s622 = scalar_lea.vmem [#allocation1], 49
        %v623 = vld [vmem:[%s622] ss:$2 sm:$0xff]
        %v624 = vrot.slane %v614, 3
        %v625 = vrot.slane %v617, 2
        %v626 = vsel %vm299, %v625, %v624
        %v627 = vsel %vm301, %v625, %v626
        %v628 = vrot.slane %v620, 1
        %v629 = vsel %vm304, %v628, %v627
        %v630 = vsel %vm306, %v628, %v629
        %v631 = vsel %vm309, %v623, %v630
        %v632 = vsel %vm311, %v623, %v631
        %633 = vrot.lane.b32.xlu0 %v632, 33
        %v634 = vpop.permute.xlu0 %633
        %vm636 = vcmask 396552
        %637 = vst.msk [vmem:[#allocation2 + $0x8] sm:$0xf] %vm636, %v634
        %v638 = vld [vmem:[#allocation2] sm:$0xff]
        %v639 = vld [vmem:[#allocation2 + $0x8] sm:$0xf]
        %642 = vst [vmem:[#allocation1] ss:$2 sm:$0xff] %v638
        %s643 = scalar_lea.vmem [#allocation1], 16
        %644 = vst [vmem:[%s643] ss:$2 sm:$0xff] %v639
        %v645 = vld.sshfl [vmem:[#allocation1] sm:$0xff pattern:$0x75316420]
        %v646 = vld.sshfl [vmem:[#allocation1 + $0x8] sm:$0xff pattern:$0x75316420]
        %v647 = vld.sshfl [vmem:[#allocation1 + $0x10] sm:$0xff pattern:$0x75316420]
        %651 = vst [vmem:[#allocation3] sm:$0xf] %v645
        %652 = vst [vmem:[#allocation3 + $0x8] sm:$0xf] %v646
        %vm653 = vcmask 257024
        %654 = vst.msk [vmem:[#allocation3 + $0x10] sm:$0xf] %vm653, %v647
        %v655 = vld [vmem:[#allocation2] sm:$0xff]
        %v656 = vld [vmem:[#allocation2 + $0x8] sm:$0xf]
        %s659 = scalar_lea.vmem [#allocation1], 1
        %660 = vst [vmem:[%s659] ss:$2 sm:$0xff] %v655
        %s661 = scalar_lea.vmem [#allocation1], 17
        %662 = vst [vmem:[%s661] ss:$2 sm:$0xff] %v656
        %v663 = vld.sshfl [vmem:[#allocation1] sm:$0xff pattern:$0x75316420]
        %v664 = vld.sshfl [vmem:[#allocation1 + $0x8] sm:$0xff pattern:$0x75316420]
        %v665 = vld.sshfl [vmem:[#allocation1 + $0x10] sm:$0xff pattern:$0x75316420]
        %666 = vrot.lane.b32.xlu0 %v663, 127
        %v667 = vpop.permute.xlu0 %666
        %668 = vrot.lane.b32.xlu0 %v664, 127
        %v669 = vpop.permute.xlu0 %668
        %670 = vrot.lane.b32.xlu0 %v665, 127
        %v671 = vpop.permute.xlu0 %670
        %v672 = vsel %vm436, %v667, %v669
        %v673 = vsel %vm436, %v669, %v671
        %677 = vst [vmem:[#allocation3] sm:$0xf0] %v672
        %678 = vst [vmem:[#allocation3 + $0x8] sm:$0xf0] %v673
        %vm679 = vcmask 261124
        %680 = vst.msk [vmem:[#allocation3 + $0x10] sm:$0xf0] %vm679, %v671
        %v681 = vld [vmem:[#allocation2] sm:$0xff]
        %v682 = vld [vmem:[#allocation2 + $0x8] sm:$0xf]
        %685 = vst [vmem:[#allocation1] ss:$2 sm:$0xff] %v681
        %s686 = scalar_lea.vmem [#allocation1], 16
        %687 = vst [vmem:[%s686] ss:$2 sm:$0xff] %v682
        %v688 = vld.sshfl [vmem:[#allocation1] sm:$0xff pattern:$0x75316420]
        %v689 = vld.sshfl [vmem:[#allocation1 + $0x8] sm:$0xff pattern:$0x75316420]
        %v690 = vld.sshfl [vmem:[#allocation1 + $0x10] sm:$0xff pattern:$0x75316420]
        %691 = vrot.lane.b32.xlu0 %v688, 126
        %v692 = vpop.permute.xlu0 %691
        %693 = vrot.lane.b32.xlu0 %v689, 126
        %v694 = vpop.permute.xlu0 %693
        %695 = vrot.lane.b32.xlu0 %v690, 126
        %v696 = vpop.permute.xlu0 %695
        %vm697 = vcmask 1031168
        %v698 = vsel %vm697, %v692, %v694
        %v699 = vsel %vm697, %v694, %v696
        %703 = vst [vmem:[#allocation3 + $0x18] sm:$0xf] %v698
        %704 = vst [vmem:[#allocation3 + $0x20] sm:$0xf] %v699
        %705 = vst.msk [vmem:[#allocation3 + $0x28] sm:$0xf] %vm653, %v696
        %v706 = vld [vmem:[#allocation2] sm:$0xff]
        %v707 = vld [vmem:[#allocation2 + $0x8] sm:$0xf]
        %s710 = scalar_lea.vmem [#allocation1], 1
        %711 = vst [vmem:[%s710] ss:$2 sm:$0xff] %v706
        %s712 = scalar_lea.vmem [#allocation1], 17
        %713 = vst [vmem:[%s712] ss:$2 sm:$0xff] %v707
        %v714 = vld.sshfl [vmem:[#allocation1] sm:$0xff pattern:$0x75316420]
        %v715 = vld.sshfl [vmem:[#allocation1 + $0x8] sm:$0xff pattern:$0x75316420]
        %v716 = vld.sshfl [vmem:[#allocation1 + $0x10] sm:$0xff pattern:$0x75316420]
        %717 = vrot.lane.b32.xlu0 %v714, 110
        %v718 = vpop.permute.xlu0 %717
        %719 = vrot.lane.b32.xlu0 %v715, 110
        %v720 = vpop.permute.xlu0 %719
        %721 = vrot.lane.b32.xlu0 %v716, 110
        %v722 = vpop.permute.xlu0 %721
        %vm723 = vcmask 900096
        %v724 = vsel %vm723, %v718, %v720
        %v725 = vsel %vm723, %v720, %v722
        %729 = vst [vmem:[#allocation3 + $0x18] sm:$0xf0] %v724
        %730 = vst [vmem:[#allocation3 + $0x20] sm:$0xf0] %v725
        %731 = vst.msk [vmem:[#allocation3 + $0x28] sm:$0xf0] %vm679, %v722
        %v732 = vld [vmem:[#allocation2] sm:$0xff]
        %v733 = vld [vmem:[#allocation2 + $0x8] sm:$0xf]
        %736 = vst [vmem:[#allocation1] ss:$2 sm:$0xff] %v732
        %s737 = scalar_lea.vmem [#allocation1], 16
        %738 = vst [vmem:[%s737] ss:$2 sm:$0xff] %v733
        %v739 = vld.sshfl [vmem:[#allocation1] sm:$0xff pattern:$0x75316420]
        %v740 = vld.sshfl [vmem:[#allocation1 + $0x8] sm:$0xff pattern:$0x75316420]
        %v741 = vld.sshfl [vmem:[#allocation1 + $0x10] sm:$0xff pattern:$0x75316420]
        %742 = vrot.lane.b32.xlu0 %v739, 109
        %v743 = vpop.permute.xlu0 %742
        %744 = vrot.lane.b32.xlu0 %v740, 109
        %v745 = vpop.permute.xlu0 %744
        %746 = vrot.lane.b32.xlu0 %v741, 109
        %v747 = vpop.permute.xlu0 %746
        %vm748 = vcmask 891904
        %v749 = vsel %vm748, %v743, %v745
        %v750 = vsel %vm748, %v745, %v747
        %754 = vst [vmem:[#allocation3 + $0x30] sm:$0xf] %v749
        %755 = vst [vmem:[#allocation3 + $0x38] sm:$0xf] %v750
        %756 = vst.msk [vmem:[#allocation3 + $0x40] sm:$0xf] %vm653, %v747
        %v757 = vld [vmem:[#allocation2] sm:$0xff]
        %v758 = vld [vmem:[#allocation2 + $0x8] sm:$0xf]
        %s761 = scalar_lea.vmem [#allocation1], 1
        %762 = vst [vmem:[%s761] ss:$2 sm:$0xff] %v757
        %s763 = scalar_lea.vmem [#allocation1], 17
        %764 = vst [vmem:[%s763] ss:$2 sm:$0xff] %v758
        %v765 = vld.sshfl [vmem:[#allocation1] sm:$0xff pattern:$0x75316420]
        %v766 = vld.sshfl [vmem:[#allocation1 + $0x8] sm:$0xff pattern:$0x75316420]
        %v767 = vld.sshfl [vmem:[#allocation1 + $0x10] sm:$0xff pattern:$0x75316420]
        %768 = vrot.lane.b32.xlu0 %v765, 108
        %v769 = vpop.permute.xlu0 %768
        %770 = vrot.lane.b32.xlu0 %v766, 108
        %v771 = vpop.permute.xlu0 %770
        %772 = vrot.lane.b32.xlu0 %v767, 108
        %v773 = vpop.permute.xlu0 %772
        %vm774 = vcmask 883712
        %v775 = vsel %vm774, %v769, %v771
        %v776 = vsel %vm774, %v771, %v773
        %780 = vst [vmem:[#allocation3 + $0x30] sm:$0xf0] %v775
        %781 = vst [vmem:[#allocation3 + $0x38] sm:$0xf0] %v776
        %782 = vst.msk [vmem:[#allocation3 + $0x40] sm:$0xf0] %vm679, %v773
        %v783 = vld [vmem:[#allocation2] sm:$0xff]
        %v784 = vld [vmem:[#allocation2 + $0x8] sm:$0xf]
        %787 = vst [vmem:[#allocation1] ss:$2 sm:$0xff] %v783
        %s788 = scalar_lea.vmem [#allocation1], 16
        %789 = vst [vmem:[%s788] ss:$2 sm:$0xff] %v784
        %v790 = vld.sshfl [vmem:[#allocation1] sm:$0xff pattern:$0x75316420]
        %v791 = vld.sshfl [vmem:[#allocation1 + $0x8] sm:$0xff pattern:$0x75316420]
        %v792 = vld.sshfl [vmem:[#allocation1 + $0x10] sm:$0xff pattern:$0x75316420]
        %793 = vrot.lane.b32.xlu0 %v790, 92
        %v794 = vpop.permute.xlu0 %793
        %795 = vrot.lane.b32.xlu0 %v791, 92
        %v796 = vpop.permute.xlu0 %795
        %797 = vrot.lane.b32.xlu0 %v792, 92
        %v798 = vpop.permute.xlu0 %797
        %vm799 = vcmask 752640
        %v800 = vsel %vm799, %v794, %v796
        %v801 = vsel %vm799, %v796, %v798
        %805 = vst [vmem:[#allocation3 + $0x48] sm:$0xf] %v800
        %806 = vst [vmem:[#allocation3 + $0x50] sm:$0xf] %v801
        %807 = vst.msk [vmem:[#allocation3 + $0x58] sm:$0xf] %vm653, %v798
        %v808 = vld [vmem:[#allocation2] sm:$0xff]
        %v809 = vld [vmem:[#allocation2 + $0x8] sm:$0xf]
        %s812 = scalar_lea.vmem [#allocation1], 1
        %813 = vst [vmem:[%s812] ss:$2 sm:$0xff] %v808
        %s814 = scalar_lea.vmem [#allocation1], 17
        %815 = vst [vmem:[%s814] ss:$2 sm:$0xff] %v809
        %v816 = vld.sshfl [vmem:[#allocation1] sm:$0xff pattern:$0x75316420]
        %v817 = vld.sshfl [vmem:[#allocation1 + $0x8] sm:$0xff pattern:$0x75316420]
        %v818 = vld.sshfl [vmem:[#allocation1 + $0x10] sm:$0xff pattern:$0x75316420]
        %819 = vrot.lane.b32.xlu0 %v816, 91
        %v820 = vpop.permute.xlu0 %819
        %821 = vrot.lane.b32.xlu0 %v817, 91
        %v822 = vpop.permute.xlu0 %821
        %823 = vrot.lane.b32.xlu0 %v818, 91
        %v824 = vpop.permute.xlu0 %823
        %vm825 = vcmask 744448
        %v826 = vsel %vm825, %v820, %v822
        %v827 = vsel %vm825, %v822, %v824
        %831 = vst [vmem:[#allocation3 + $0x48] sm:$0xf0] %v826
        %832 = vst [vmem:[#allocation3 + $0x50] sm:$0xf0] %v827
        %833 = vst.msk [vmem:[#allocation3 + $0x58] sm:$0xf0] %vm679, %v824
        %v834 = vld [vmem:[#allocation2] sm:$0xff]
        %v835 = vld [vmem:[#allocation2 + $0x8] sm:$0xf]
        %838 = vst [vmem:[#allocation1] ss:$2 sm:$0xff] %v834
        %s839 = scalar_lea.vmem [#allocation1], 16
        %840 = vst [vmem:[%s839] ss:$2 sm:$0xff] %v835
        %v841 = vld.sshfl [vmem:[#allocation1] sm:$0xff pattern:$0x75316420]
        %v842 = vld.sshfl [vmem:[#allocation1 + $0x8] sm:$0xff pattern:$0x75316420]
        %v843 = vld.sshfl [vmem:[#allocation1 + $0x10] sm:$0xff pattern:$0x75316420]
        %844 = vrot.lane.b32.xlu0 %v841, 90
        %v845 = vpop.permute.xlu0 %844
        %846 = vrot.lane.b32.xlu0 %v842, 90
        %v847 = vpop.permute.xlu0 %846
        %848 = vrot.lane.b32.xlu0 %v843, 90
        %v849 = vpop.permute.xlu0 %848
        %vm850 = vcmask 736256
        %v851 = vsel %vm850, %v845, %v847
        %v852 = vsel %vm850, %v847, %v849
        %856 = vst [vmem:[#allocation3 + $0x60] sm:$0xf] %v851
        %857 = vst [vmem:[#allocation3 + $0x68] sm:$0xf] %v852
        %858 = vst.msk [vmem:[#allocation3 + $0x70] sm:$0xf] %vm653, %v849
        %v859 = vld [vmem:[%s1] sm:$0xff]
        %v860 = vld [vmem:[%s1 + $0x8] sm:$0xff]
        %v861 = vld [vmem:[#allocation3] sm:$0xff]
        %v862 = vld [vmem:[#allocation3 + $0x8] sm:$0xff]
        %v863 = vld [vmem:[#allocation3 + $0x10] sm:$0xff]
        %v864 = vld [vmem:[#allocation3 + $0x18] sm:$0xff]
        %v865 = vld [vmem:[#allocation3 + $0x20] sm:$0xff]
        %v866 = vld [vmem:[#allocation3 + $0x28] sm:$0xff]
        %v867 = vld [vmem:[#allocation3 + $0x30] sm:$0xff]
        %v868 = vld [vmem:[#allocation3 + $0x38] sm:$0xff]
        %v869 = vld [vmem:[#allocation3 + $0x40] sm:$0xff]
        %v870 = vld [vmem:[#allocation3 + $0x48] sm:$0xff]
        %v871 = vld [vmem:[#allocation3 + $0x50] sm:$0xff]
        %v872 = vld [vmem:[#allocation3 + $0x58] sm:$0xff]
        %v873 = vld [vmem:[#allocation3 + $0x60] sm:$0xf]
        %v874 = vld [vmem:[#allocation3 + $0x68] sm:$0xf]
        %v875 = vld [vmem:[#allocation3 + $0x70] sm:$0xf]
        %v876 = vld [vmem:[%s2] sm:$0xff]
        %v877 = vld [vmem:[%s2 + $0x8] sm:$0xff]
        %879 = vset.pattern.permute.xlu0 0
        %880 = vperm.xlu0 %879, %v876
        %v881 = vpop.permute.xlu0 %880
        %884 = vset.pattern.permute.xlu0 0
        %885 = vperm.xlu0 %884, %v877
        %v886 = vpop.permute.xlu0 %885
        %vm888 = vcmask 293888
        %v890 = vsel %vm888, %v859, 0
        %v893 = vsel %vm888, %v860, 0
        %vm895 = vcmask 1043456
        %v897 = vsel %vm895, %v873, 0
        %v900 = vsel %vm895, %v874, 0
        %v903 = vsel %vm895, %v875, 0
        %905 = vmatpush.msra.mxu0 0.0
        %906 = vmatpush.msra.mxu0 0.0
        %907 = vmatpush.msra.mxu0 0.0
        %908 = vmatpush.msra.mxu0 0.0
        %909 = vmatpush.msra.mxu0 0.0
        %910 = vmatpush.msra.mxu0 0.0
        %911 = vmatpush.msra.mxu0 0.0
        %912 = vmatpush.msra.mxu0 0.0
        %913 = vmatpush.msra.mxu0 0.0
        %914 = vmatpush.msra.mxu0 0.0
        %915 = vmatpush.msra.mxu0 0.0
        %916 = vmatpush.msra.mxu0 %v897
        %917 = vmatpush.msra.mxu0 %v870
        %918 = vmatpush.msra.mxu0 %v867
        %919 = vmatpush.msra.mxu0 %v864
        %920 = vmatpush.msra.mxu0 %v861
        %921 = vmatmul.f32.gmra.mxu0 %v890
        %v922 = vpop.f32.mrf.mxu0
        %v923 = vadd.f32 %v881, %v922
        %924 = vmatmul.f32.gmra.mxu0 %v893
        %v925 = vpop.f32.mrf.mxu0
        %v926 = vadd.f32 %v886, %v925
        %927 = vdwg.mxu0
        %928 = vmatpush.msra.mxu0 0.0
        %929 = vmatpush.msra.mxu0 0.0
        %930 = vmatpush.msra.mxu0 0.0
        %931 = vmatpush.msra.mxu0 0.0
        %932 = vmatpush.msra.mxu0 0.0
        %933 = vmatpush.msra.mxu0 0.0
        %934 = vmatpush.msra.mxu0 0.0
        %935 = vmatpush.msra.mxu0 0.0
        %936 = vmatpush.msra.mxu0 0.0
        %937 = vmatpush.msra.mxu0 0.0
        %938 = vmatpush.msra.mxu0 0.0
        %939 = vmatpush.msra.mxu0 %v900
        %940 = vmatpush.msra.mxu0 %v871
        %941 = vmatpush.msra.mxu0 %v868
        %942 = vmatpush.msra.mxu0 %v865
        %943 = vmatpush.msra.mxu0 %v862
        %944 = vmatmul.f32.gmra.mxu0 %v890
        %v945 = vpop.f32.mrf.mxu0
        %v946 = vadd.f32 %v881, %v945
        %947 = vmatmul.f32.gmra.mxu0 %v893
        %v948 = vpop.f32.mrf.mxu0
        %v949 = vadd.f32 %v886, %v948
        %950 = vdwg.mxu0
        %951 = vmatpush.msra.mxu0 0.0
        %952 = vmatpush.msra.mxu0 0.0
        %953 = vmatpush.msra.mxu0 0.0
        %954 = vmatpush.msra.mxu0 0.0
        %955 = vmatpush.msra.mxu0 0.0
        %956 = vmatpush.msra.mxu0 0.0
        %957 = vmatpush.msra.mxu0 0.0
        %958 = vmatpush.msra.mxu0 0.0
        %959 = vmatpush.msra.mxu0 0.0
        %960 = vmatpush.msra.mxu0 0.0
        %961 = vmatpush.msra.mxu0 0.0
        %962 = vmatpush.msra.mxu0 %v903
        %963 = vmatpush.msra.mxu0 %v872
        %964 = vmatpush.msra.mxu0 %v869
        %965 = vmatpush.msra.mxu0 %v866
        %966 = vmatpush.msra.mxu0 %v863
        %967 = vmatmul.f32.gmra.mxu0 %v890
        %v968 = vpop.f32.mrf.mxu0
        %v969 = vadd.f32 %v881, %v968
        %970 = vmatmul.f32.gmra.mxu0 %v893
        %v971 = vpop.f32.mrf.mxu0
        %v972 = vadd.f32 %v886, %v971
        %973 = vdwg.mxu0
        %v974 = vxor.u32 %v926, 2147483648
        %v975 = vxor.u32 %v949, 2147483648
        %v976 = vxor.u32 %v972, 2147483648
        %v977 = vmul.f32 %v974, 1.442695
        %v978 = vpow.pop %v977
        %v979 = vmul.f32 %v975, 1.442695
        %v980 = vpow.pop %v979
        %v981 = vmul.f32 %v976, 1.442695
        %v982 = vpow.pop %v981
        %v983 = vadd.f32 %v978, 1.0
        %v984 = vadd.f32 %v980, 1.0
        %v985 = vadd.f32 %v982, 1.0
        %v986 = vrcp.pop %v983
        %v987 = vmul.f32 %v983, %v986
        %v988 = vsub.f32 1.0, %v987
        %v989 = vmul.f32 %v986, %v988
        %v990 = vadd.f32 %v986, %v989
        %vm991 = vweird.f32 %v983
        %vm992 = vweird.f32 %v986
        %vm993 = vmor %vm991, %vm992
        %v994 = vsel %vm993, %v986, %v990
        %v995 = vand.u32 2147483647, %v983
        %vm996 = vcmp.eq.f32.partialorder %v995, 8.507059e+37
        %v997 = vand.u32 %v983, 2147483648
        %v998 = vor.u32 1.1754944e-38, %v997
        %v999 = vsel %vm996, %v998, %v994
        %v1000 = vmul.f32 1.0, %v999
        %v1001 = vrcp.pop %v984
        %v1002 = vmul.f32 %v984, %v1001
        %v1003 = vsub.f32 1.0, %v1002
        %v1004 = vmul.f32 %v1001, %v1003
        %v1005 = vadd.f32 %v1001, %v1004
        %vm1006 = vweird.f32 %v984
        %vm1007 = vweird.f32 %v1001
        %vm1008 = vmor %vm1006, %vm1007
        %v1009 = vsel %vm1008, %v1001, %v1005
        %v1010 = vand.u32 2147483647, %v984
        %vm1011 = vcmp.eq.f32.partialorder %v1010, 8.507059e+37
        %v1012 = vand.u32 %v984, 2147483648
        %v1013 = vor.u32 1.1754944e-38, %v1012
        %v1014 = vsel %vm1011, %v1013, %v1009
        %v1015 = vmul.f32 1.0, %v1014
        %v1016 = vrcp.pop %v985
        %v1017 = vmul.f32 %v985, %v1016
        %v1018 = vsub.f32 1.0, %v1017
        %v1019 = vmul.f32 %v1016, %v1018
        %v1020 = vadd.f32 %v1016, %v1019
        %vm1021 = vweird.f32 %v985
        %vm1022 = vweird.f32 %v1016
        %vm1023 = vmor %vm1021, %vm1022
        %v1024 = vsel %vm1023, %v1016, %v1020
        %v1025 = vand.u32 2147483647, %v985
        %vm1026 = vcmp.eq.f32.partialorder %v1025, 8.507059e+37
        %v1027 = vand.u32 %v985, 2147483648
        %v1028 = vor.u32 1.1754944e-38, %v1027
        %v1029 = vsel %vm1026, %v1028, %v1024
        %v1030 = vmul.f32 1.0, %v1029
        %v1031 = vmul.f32 %v923, %v1000
        %v1032 = vmul.f32 %v946, %v1015
        %v1033 = vmul.f32 %v969, %v1030
        %1034 = vst [vmem:[#allocation4] sm:$0xff] %v1031
        %1035 = vst [vmem:[#allocation4 + $0x8] sm:$0xff] %v1032
        %vm1036 = vcmask 261120
        %1037 = vst.msk [vmem:[#allocation4 + $0x10] sm:$0xff] %vm1036, %v1033
        %1038 = vst [vmem:[#allocation5] sm:$0xff] 0.0
        %1039 = vst [vmem:[#allocation5 + $0x8] sm:$0xff] 0.0
        %vm1040 = vcmask 703488
        %1041 = vst.msk [vmem:[#allocation5 + $0x10] sm:$0xff] %vm1040, 0.0
        %v1042 = vld [vmem:[#allocation4] sm:$0xff]
        %vm1043 = vcmask 130048
        %1044 = vst.msk [vmem:[%s282] sm:$0xff] %vm1043, %v1042
        %1046 = vrot.lane.b32.xlu0 %v1042, 19
        %v1047 = vpop.permute.xlu0 %1046
        %vm1049 = vcmask 285848
        %1050 = vst.msk [vmem:[#allocation5] sm:$0xff] %vm1049, %v1047
        %v1051 = vld [vmem:[#allocation4] sm:$0xff]
        %1053 = vrot.lane.b32.xlu0 %v1051, 126
        %v1054 = vpop.permute.xlu0 %1053
        %vm1056 = vcmask 261248
        %1057 = vst.msk [vmem:[%s282] sm:$0xff] %vm1056, %v1054
        %1058 = vrot.lane.b32.xlu0 %v1051, 19
        %v1059 = vpop.permute.xlu0 %1058
        %vm1061 = vcmask 433448
        %1062 = vst.msk [vmem:[#allocation5] sm:$0xff] %vm1061, %v1059
        %v1063 = vld [vmem:[#allocation4] sm:$0xff]
        %1065 = vrot.lane.b32.xlu0 %v1063, 124
        %v1066 = vpop.permute.xlu0 %1065
        %vm1068 = vcmask 392448
        %1069 = vst.msk [vmem:[%s282] sm:$0xff] %vm1068, %v1066
        %1070 = vrot.lane.b32.xlu0 %v1063, 19
        %v1071 = vpop.permute.xlu0 %1070
        %vm1073 = vcmask 581048
        %1074 = vst.msk [vmem:[#allocation5] sm:$0xff] %vm1073, %v1071
        %v1075 = vld [vmem:[#allocation4] sm:$0xff]
        %1077 = vrot.lane.b32.xlu0 %v1075, 122
        %v1078 = vpop.permute.xlu0 %1077
        %vm1080 = vcmask 523648
        %1081 = vst.msk [vmem:[%s282] sm:$0xff] %vm1080, %v1078
        %1082 = vrot.lane.b32.xlu0 %v1075, 19
        %v1083 = vpop.permute.xlu0 %1082
        %vm1085 = vcmask 728648
        %1086 = vst.msk [vmem:[#allocation5] sm:$0xff] %vm1085, %v1083
        %v1087 = vld [vmem:[#allocation4] sm:$0xff]
        %1089 = vrot.lane.b32.xlu0 %v1087, 120
        %v1090 = vpop.permute.xlu0 %1089
        %vm1092 = vcmask 654848
        %1093 = vst.msk [vmem:[%s282] sm:$0xff] %vm1092, %v1090
        %1094 = vrot.lane.b32.xlu0 %v1087, 19
        %v1095 = vpop.permute.xlu0 %1094
        %vm1097 = vcmask 876248
        %1098 = vst.msk [vmem:[#allocation5] sm:$0xff] %vm1097, %v1095
        %v1099 = vld [vmem:[#allocation4] sm:$0xff]
        %1101 = vrot.lane.b32.xlu0 %v1099, 118
        %v1102 = vpop.permute.xlu0 %1101
        %vm1104 = vcmask 786048
        %1105 = vst.msk [vmem:[%s282] sm:$0xff] %vm1104, %v1102
        %1106 = vrot.lane.b32.xlu0 %v1099, 19
        %v1107 = vpop.permute.xlu0 %1106
        %vm1109 = vcmask 1023848
        %1110 = vst.msk [vmem:[#allocation5] sm:$0xff] %vm1109, %v1107
        %v1111 = vld [vmem:[#allocation4] sm:$0xff]
        %1113 = vrot.lane.b32.xlu0 %v1111, 116
        %v1114 = vpop.permute.xlu0 %1113
        %vm1116 = vcmask 917248
        %1117 = vst.msk [vmem:[%s282] sm:$0xff] %vm1116, %v1114
        %1118 = vrot.lane.b32.xlu0 %v1111, 19
        %v1119 = vpop.permute.xlu0 %1118
        %vm1121 = vcmask 1048568
        %1122 = vst.msk [vmem:[#allocation5] sm:$0xff] %vm1121, %v1119
        %vm1123 = vcmask 121856
        %1124 = vst.msk [vmem:[#allocation5 + $0x8] sm:$0xff] %vm1123, %v1119
        %v1125 = vld [vmem:[#allocation4] sm:$0xff]
        %v1126 = vld [vmem:[#allocation4 + $0x8] sm:$0xff]
        %1129 = vrot.lane.b32.xlu0 %v1125, 114
        %v1130 = vpop.permute.xlu0 %1129
        %1131 = vrot.lane.b32.xlu0 %v1126, 114
        %v1132 = vpop.permute.xlu0 %1131
        %vm1133 = vcmask 932864
        %v1134 = vsel %vm1133, %v1130, %v1132
        %vm1136 = vcmask 1048448
        %1137 = vst.msk [vmem:[%s282] sm:$0xff] %vm1136, %v1134
        %1138 = vrot.lane.b32.xlu0 %v1125, 19
        %v1139 = vpop.permute.xlu0 %1138
        %1140 = vrot.lane.b32.xlu0 %v1126, 19
        %v1141 = vpop.permute.xlu0 %1140
        %vm1142 = vcmask 154624
        %v1143 = vsel %vm1142, %v1139, %v1141
        %vm1145 = vcmask 269448
        %1146 = vst.msk [vmem:[#allocation5 + $0x8] sm:$0xff] %vm1145, %v1143
        %v1147 = vld [vmem:[#allocation4 + $0x8] sm:$0xff]
        %1149 = vrot.lane.b32.xlu0 %v1147, 112
        %v1150 = vpop.permute.xlu0 %1149
        %1152 = vst.msk [vmem:[%s282 + $0x8] sm:$0xff] %vm1043, %v1150
        %1153 = vrot.lane.b32.xlu0 %v1147, 19
        %v1154 = vpop.permute.xlu0 %1153
        %vm1156 = vcmask 417048
        %1157 = vst.msk [vmem:[#allocation5 + $0x8] sm:$0xff] %vm1156, %v1154
        %v1158 = vld [vmem:[#allocation4 + $0x8] sm:$0xff]
        %1160 = vrot.lane.b32.xlu0 %v1158, 110
        %v1161 = vpop.permute.xlu0 %1160
        %1163 = vst.msk [vmem:[%s282 + $0x8] sm:$0xff] %vm1056, %v1161
        %1164 = vrot.lane.b32.xlu0 %v1158, 19
        %v1165 = vpop.permute.xlu0 %1164
        %vm1167 = vcmask 564648
        %1168 = vst.msk [vmem:[#allocation5 + $0x8] sm:$0xff] %vm1167, %v1165
        %v1169 = vld [vmem:[#allocation4 + $0x8] sm:$0xff]
        %1171 = vrot.lane.b32.xlu0 %v1169, 108
        %v1172 = vpop.permute.xlu0 %1171
        %1174 = vst.msk [vmem:[%s282 + $0x8] sm:$0xff] %vm1068, %v1172
        %1175 = vrot.lane.b32.xlu0 %v1169, 19
        %v1176 = vpop.permute.xlu0 %1175
        %vm1178 = vcmask 712248
        %1179 = vst.msk [vmem:[#allocation5 + $0x8] sm:$0xff] %vm1178, %v1176
        %v1180 = vld [vmem:[#allocation4 + $0x8] sm:$0xff]
        %1182 = vrot.lane.b32.xlu0 %v1180, 106
        %v1183 = vpop.permute.xlu0 %1182
        %1185 = vst.msk [vmem:[%s282 + $0x8] sm:$0xff] %vm1080, %v1183
        %1186 = vrot.lane.b32.xlu0 %v1180, 19
        %v1187 = vpop.permute.xlu0 %1186
        %vm1189 = vcmask 859848
        %1190 = vst.msk [vmem:[#allocation5 + $0x8] sm:$0xff] %vm1189, %v1187
        %v1191 = vld [vmem:[#allocation4 + $0x8] sm:$0xff]
        %1193 = vrot.lane.b32.xlu0 %v1191, 104
        %v1194 = vpop.permute.xlu0 %1193
        %1196 = vst.msk [vmem:[%s282 + $0x8] sm:$0xff] %vm1092, %v1194
        %1197 = vrot.lane.b32.xlu0 %v1191, 19
        %v1198 = vpop.permute.xlu0 %1197
        %vm1200 = vcmask 1007448
        %1201 = vst.msk [vmem:[#allocation5 + $0x8] sm:$0xff] %vm1200, %v1198
        %v1202 = vld [vmem:[#allocation4 + $0x8] sm:$0xff]
        %1204 = vrot.lane.b32.xlu0 %v1202, 102
        %v1205 = vpop.permute.xlu0 %1204
        %1207 = vst.msk [vmem:[%s282 + $0x8] sm:$0xff] %vm1104, %v1205
        %1208 = vrot.lane.b32.xlu0 %v1202, 19
        %v1209 = vpop.permute.xlu0 %1208
        %vm1211 = vcmask 1048552
        %1212 = vst.msk [vmem:[#allocation5 + $0x8] sm:$0xff] %vm1211, %v1209
        %vm1213 = vcmask 105472
        %1214 = vst.msk [vmem:[#allocation5 + $0x10] sm:$0xff] %vm1213, %v1209
        %v1215 = vld [vmem:[#allocation4 + $0x8] sm:$0xff]
        %v1216 = vld [vmem:[#allocation4 + $0x10] sm:$0xff]
        %1219 = vrot.lane.b32.xlu0 %v1215, 100
        %v1220 = vpop.permute.xlu0 %1219
        %1221 = vrot.lane.b32.xlu0 %v1216, 100
        %v1222 = vpop.permute.xlu0 %1221
        %vm1223 = vcmask 818176
        %v1224 = vsel %vm1223, %v1220, %v1222
        %1226 = vst.msk [vmem:[%s282 + $0x8] sm:$0xff] %vm1116, %v1224
        %1227 = vrot.lane.b32.xlu0 %v1215, 19
        %v1228 = vpop.permute.xlu0 %1227
        %1229 = vrot.lane.b32.xlu0 %v1216, 19
        %v1230 = vpop.permute.xlu0 %1229
        %v1231 = vsel %vm1142, %v1228, %v1230
        %vm1233 = vcmask 253048
        %1234 = vst.msk [vmem:[#allocation5 + $0x10] sm:$0xff] %vm1233, %v1231
        %v1235 = vld [vmem:[#allocation4 + $0x10] sm:$0xff]
        %1237 = vrot.lane.b32.xlu0 %v1235, 98
        %v1238 = vpop.permute.xlu0 %1237
        %1240 = vst.msk [vmem:[%s282 + $0x8] sm:$0xff] %vm1136, %v1238
        %1241 = vrot.lane.b32.xlu0 %v1235, 19
        %v1242 = vpop.permute.xlu0 %1241
        %vm1244 = vcmask 400648
        %1245 = vst.msk [vmem:[#allocation5 + $0x10] sm:$0xff] %vm1244, %v1242
        %v1246 = vld [vmem:[#allocation5] sm:$0xff]
        %v1247 = vld [vmem:[#allocation5 + $0x8] sm:$0xff]
        %v1248 = vld [vmem:[#allocation5 + $0x10] sm:$0xff]
        %1249 = vst [vmem:[#allocation6] sm:$0xff] %v1246
        %1250 = vst [vmem:[#allocation6 + $0x8] sm:$0xff] %v1247
        %1251 = vst.msk [vmem:[#allocation6 + $0x10] sm:$0xff] %vm1036, %v1248
        %v1252 = vld [vmem:[#allocation5] sm:$0xff]
        %v1253 = vld [vmem:[#allocation5 + $0x8] sm:$0xff]
        %v1254 = vld [vmem:[#allocation5 + $0x10] sm:$0xff]
        %1258 = vrot.lane.b32.xlu0 %v1252, 127
        %v1259 = vpop.permute.xlu0 %1258
        %1260 = vrot.lane.b32.xlu0 %v1253, 127
        %v1261 = vpop.permute.xlu0 %1260
        %1262 = vrot.lane.b32.xlu0 %v1254, 127
        %v1263 = vpop.permute.xlu0 %1262
        %v1264 = vsel %vm436, %v1259, %v1261
        %v1265 = vsel %vm436, %v1261, %v1263
        %1269 = vst [vmem:[#allocation6 + $0x18] sm:$0xff] %v1264
        %1270 = vst [vmem:[#allocation6 + $0x20] sm:$0xff] %v1265
        %1271 = vst.msk [vmem:[#allocation6 + $0x28] sm:$0xff] %vm1036, %v1263
        %v1272 = vld [vmem:[#allocation5] sm:$0xff]
        %v1273 = vld [vmem:[#allocation5 + $0x8] sm:$0xff]
        %v1274 = vld [vmem:[#allocation5 + $0x10] sm:$0xff]
        %1278 = vrot.lane.b32.xlu0 %v1272, 126
        %v1279 = vpop.permute.xlu0 %1278
        %1280 = vrot.lane.b32.xlu0 %v1273, 126
        %v1281 = vpop.permute.xlu0 %1280
        %1282 = vrot.lane.b32.xlu0 %v1274, 126
        %v1283 = vpop.permute.xlu0 %1282
        %v1284 = vsel %vm697, %v1279, %v1281
        %v1285 = vsel %vm697, %v1281, %v1283
        %1289 = vst [vmem:[#allocation6 + $0x30] sm:$0xff] %v1284
        %1290 = vst [vmem:[#allocation6 + $0x38] sm:$0xff] %v1285
        %1291 = vst.msk [vmem:[#allocation6 + $0x40] sm:$0xff] %vm1036, %v1283
        %v1292 = vld [vmem:[#allocation5] sm:$0xff]
        %v1293 = vld [vmem:[#allocation5 + $0x8] sm:$0xff]
        %v1294 = vld [vmem:[#allocation5 + $0x10] sm:$0xff]
        %1298 = vrot.lane.b32.xlu0 %v1292, 110
        %v1299 = vpop.permute.xlu0 %1298
        %1300 = vrot.lane.b32.xlu0 %v1293, 110
        %v1301 = vpop.permute.xlu0 %1300
        %1302 = vrot.lane.b32.xlu0 %v1294, 110
        %v1303 = vpop.permute.xlu0 %1302
        %v1304 = vsel %vm723, %v1299, %v1301
        %v1305 = vsel %vm723, %v1301, %v1303
        %1309 = vst [vmem:[#allocation6 + $0x48] sm:$0xff] %v1304
        %1310 = vst [vmem:[#allocation6 + $0x50] sm:$0xff] %v1305
        %1311 = vst.msk [vmem:[#allocation6 + $0x58] sm:$0xff] %vm1036, %v1303
        %v1312 = vld [vmem:[#allocation5] sm:$0xff]
        %v1313 = vld [vmem:[#allocation5 + $0x8] sm:$0xff]
        %v1314 = vld [vmem:[#allocation5 + $0x10] sm:$0xff]
        %1318 = vrot.lane.b32.xlu0 %v1312, 109
        %v1319 = vpop.permute.xlu0 %1318
        %1320 = vrot.lane.b32.xlu0 %v1313, 109
        %v1321 = vpop.permute.xlu0 %1320
        %1322 = vrot.lane.b32.xlu0 %v1314, 109
        %v1323 = vpop.permute.xlu0 %1322
        %v1324 = vsel %vm748, %v1319, %v1321
        %v1325 = vsel %vm748, %v1321, %v1323
        %1329 = vst [vmem:[#allocation6 + $0x60] sm:$0xff] %v1324
        %1330 = vst [vmem:[#allocation6 + $0x68] sm:$0xff] %v1325
        %1331 = vst.msk [vmem:[#allocation6 + $0x70] sm:$0xff] %vm1036, %v1323
        %v1332 = vld [vmem:[#allocation5] sm:$0xff]
        %v1333 = vld [vmem:[#allocation5 + $0x8] sm:$0xff]
        %v1334 = vld [vmem:[#allocation5 + $0x10] sm:$0xff]
        %1338 = vrot.lane.b32.xlu0 %v1332, 108
        %v1339 = vpop.permute.xlu0 %1338
        %1340 = vrot.lane.b32.xlu0 %v1333, 108
        %v1341 = vpop.permute.xlu0 %1340
        %1342 = vrot.lane.b32.xlu0 %v1334, 108
        %v1343 = vpop.permute.xlu0 %1342
        %v1344 = vsel %vm774, %v1339, %v1341
        %v1345 = vsel %vm774, %v1341, %v1343
        %1349 = vst [vmem:[#allocation6 + $0x78] sm:$0xff] %v1344
        %1350 = vst [vmem:[#allocation6 + $0x80] sm:$0xff] %v1345
        %1351 = vst.msk [vmem:[#allocation6 + $0x88] sm:$0xff] %vm1036, %v1343
        %v1352 = vld [vmem:[#allocation5] sm:$0xff]
        %v1353 = vld [vmem:[#allocation5 + $0x8] sm:$0xff]
        %v1354 = vld [vmem:[#allocation5 + $0x10] sm:$0xff]
        %1358 = vrot.lane.b32.xlu0 %v1352, 92
        %v1359 = vpop.permute.xlu0 %1358
        %1360 = vrot.lane.b32.xlu0 %v1353, 92
        %v1361 = vpop.permute.xlu0 %1360
        %1362 = vrot.lane.b32.xlu0 %v1354, 92
        %v1363 = vpop.permute.xlu0 %1362
        %v1364 = vsel %vm799, %v1359, %v1361
        %v1365 = vsel %vm799, %v1361, %v1363
        %1369 = vst [vmem:[#allocation6 + $0x90] sm:$0xff] %v1364
        %1370 = vst [vmem:[#allocation6 + $0x98] sm:$0xff] %v1365
        %1371 = vst.msk [vmem:[#allocation6 + $0xa0] sm:$0xff] %vm1036, %v1363
        %v1372 = vld [vmem:[#allocation5] sm:$0xff]
        %v1373 = vld [vmem:[#allocation5 + $0x8] sm:$0xff]
        %v1374 = vld [vmem:[#allocation5 + $0x10] sm:$0xff]
        %1378 = vrot.lane.b32.xlu0 %v1372, 91
        %v1379 = vpop.permute.xlu0 %1378
        %1380 = vrot.lane.b32.xlu0 %v1373, 91
        %v1381 = vpop.permute.xlu0 %1380
        %1382 = vrot.lane.b32.xlu0 %v1374, 91
        %v1383 = vpop.permute.xlu0 %1382
        %v1384 = vsel %vm825, %v1379, %v1381
        %v1385 = vsel %vm825, %v1381, %v1383
        %1389 = vst [vmem:[#allocation6 + $0xa8] sm:$0xff] %v1384
        %1390 = vst [vmem:[#allocation6 + $0xb0] sm:$0xff] %v1385
        %1391 = vst.msk [vmem:[#allocation6 + $0xb8] sm:$0xff] %vm1036, %v1383
        %v1392 = vld [vmem:[#allocation5] sm:$0xff]
        %v1393 = vld [vmem:[#allocation5 + $0x8] sm:$0xff]
        %v1394 = vld [vmem:[#allocation5 + $0x10] sm:$0xff]
        %1398 = vrot.lane.b32.xlu0 %v1392, 90
        %v1399 = vpop.permute.xlu0 %1398
        %1400 = vrot.lane.b32.xlu0 %v1393, 90
        %v1401 = vpop.permute.xlu0 %1400
        %1402 = vrot.lane.b32.xlu0 %v1394, 90
        %v1403 = vpop.permute.xlu0 %1402
        %v1404 = vsel %vm850, %v1399, %v1401
        %v1405 = vsel %vm850, %v1401, %v1403
        %1409 = vst [vmem:[#allocation6 + $0xc0] sm:$0xff] %v1404
        %1410 = vst [vmem:[#allocation6 + $0xc8] sm:$0xff] %v1405
        %1411 = vst.msk [vmem:[#allocation6 + $0xd0] sm:$0xff] %vm1036, %v1403
        %v1412 = vld [vmem:[%s3] sm:$0xff]
        %v1413 = vld [vmem:[#allocation6] sm:$0xff]
        %v1414 = vld [vmem:[#allocation6 + $0x8] sm:$0xff]
        %v1415 = vld [vmem:[#allocation6 + $0x10] sm:$0xff]
        %v1416 = vld [vmem:[#allocation6 + $0x18] sm:$0xff]
        %v1417 = vld [vmem:[#allocation6 + $0x20] sm:$0xff]
        %v1418 = vld [vmem:[#allocation6 + $0x28] sm:$0xff]
        %v1419 = vld [vmem:[#allocation6 + $0x30] sm:$0xff]
        %v1420 = vld [vmem:[#allocation6 + $0x38] sm:$0xff]
        %v1421 = vld [vmem:[#allocation6 + $0x40] sm:$0xff]
        %v1422 = vld [vmem:[#allocation6 + $0x48] sm:$0xff]
        %v1423 = vld [vmem:[#allocation6 + $0x50] sm:$0xff]
        %v1424 = vld [vmem:[#allocation6 + $0x58] sm:$0xff]
        %v1425 = vld [vmem:[#allocation6 + $0x60] sm:$0xff]
        %v1426 = vld [vmem:[#allocation6 + $0x68] sm:$0xff]
        %v1427 = vld [vmem:[#allocation6 + $0x70] sm:$0xff]
        %v1428 = vld [vmem:[#allocation6 + $0x78] sm:$0xff]
        %v1429 = vld [vmem:[#allocation6 + $0x80] sm:$0xff]
        %v1430 = vld [vmem:[#allocation6 + $0x88] sm:$0xff]
        %v1431 = vld [vmem:[#allocation6 + $0x90] sm:$0xff]
        %v1432 = vld [vmem:[#allocation6 + $0x98] sm:$0xff]
        %v1433 = vld [vmem:[#allocation6 + $0xa0] sm:$0xff]
        %v1434 = vld [vmem:[#allocation6 + $0xa8] sm:$0xff]
        %v1435 = vld [vmem:[#allocation6 + $0xb0] sm:$0xff]
        %v1436 = vld [vmem:[#allocation6 + $0xb8] sm:$0xff]
        %v1437 = vld [vmem:[#allocation6 + $0xc0] sm:$0xff]
        %v1438 = vld [vmem:[#allocation6 + $0xc8] sm:$0xff]
        %v1439 = vld [vmem:[#allocation6 + $0xd0] sm:$0xff]
        %v1440 = vld [vmem:[%s4] sm:$0xff]
        %1442 = vset.pattern.permute.xlu0 0
        %1443 = vperm.xlu0 %1442, %v1440
        %v1444 = vpop.permute.xlu0 %1443
        %vm1446 = vcmask 588800
        %v1448 = vsel %vm1446, %v1412, 0
        %1450 = vmatpush.msra.mxu0 0.0
        %1451 = vmatpush.msra.mxu0 0.0
        %1452 = vmatpush.msra.mxu0 0.0
        %1453 = vmatpush.msra.mxu0 0.0
        %1454 = vmatpush.msra.mxu0 0.0
        %1455 = vmatpush.msra.mxu0 0.0
        %1456 = vmatpush.msra.mxu0 0.0
        %1457 = vmatpush.msra.mxu0 %v1437
        %1458 = vmatpush.msra.mxu0 %v1434
        %1459 = vmatpush.msra.mxu0 %v1431
        %1460 = vmatpush.msra.mxu0 %v1428
        %1461 = vmatpush.msra.mxu0 %v1425
        %1462 = vmatpush.msra.mxu0 %v1422
        %1463 = vmatpush.msra.mxu0 %v1419
        %1464 = vmatpush.msra.mxu0 %v1416
        %1465 = vmatpush.msra.mxu0 %v1413
        %1466 = vmatmul.f32.gmra.mxu0 %v1448
        %v1467 = vpop.f32.mrf.mxu0
        %v1468 = vadd.f32 %v1444, %v1467
        %1469 = vdwg.mxu0
        %1470 = vmatpush.msra.mxu0 0.0
        %1471 = vmatpush.msra.mxu0 0.0
        %1472 = vmatpush.msra.mxu0 0.0
        %1473 = vmatpush.msra.mxu0 0.0
        %1474 = vmatpush.msra.mxu0 0.0
        %1475 = vmatpush.msra.mxu0 0.0
        %1476 = vmatpush.msra.mxu0 0.0
        %1477 = vmatpush.msra.mxu0 %v1438
        %1478 = vmatpush.msra.mxu0 %v1435
        %1479 = vmatpush.msra.mxu0 %v1432
        %1480 = vmatpush.msra.mxu0 %v1429
        %1481 = vmatpush.msra.mxu0 %v1426
        %1482 = vmatpush.msra.mxu0 %v1423
        %1483 = vmatpush.msra.mxu0 %v1420
        %1484 = vmatpush.msra.mxu0 %v1417
        %1485 = vmatpush.msra.mxu0 %v1414
        %1486 = vmatmul.f32.gmra.mxu0 %v1448
        %v1487 = vpop.f32.mrf.mxu0
        %v1488 = vadd.f32 %v1444, %v1487
        %1489 = vdwg.mxu0
        %1490 = vmatpush.msra.mxu0 0.0
        %1491 = vmatpush.msra.mxu0 0.0
        %1492 = vmatpush.msra.mxu0 0.0
        %1493 = vmatpush.msra.mxu0 0.0
        %1494 = vmatpush.msra.mxu0 0.0
        %1495 = vmatpush.msra.mxu0 0.0
        %1496 = vmatpush.msra.mxu0 0.0
        %1497 = vmatpush.msra.mxu0 %v1439
        %1498 = vmatpush.msra.mxu0 %v1436
        %1499 = vmatpush.msra.mxu0 %v1433
        %1500 = vmatpush.msra.mxu0 %v1430
        %1501 = vmatpush.msra.mxu0 %v1427
        %1502 = vmatpush.msra.mxu0 %v1424
        %1503 = vmatpush.msra.mxu0 %v1421
        %1504 = vmatpush.msra.mxu0 %v1418
        %1505 = vmatpush.msra.mxu0 %v1415
        %1506 = vmatmul.f32.gmra.mxu0 %v1448
        %v1507 = vpop.f32.mrf.mxu0
        %v1508 = vadd.f32 %v1444, %v1507
        %1509 = vdwg.mxu0
        %1510 = vst [vmem:[#allocation7] sm:$0xff] %v1468
        %1511 = vst [vmem:[#allocation7 + $0x8] sm:$0xff] %v1488
        %1512 = vst.msk [vmem:[#allocation7 + $0x10] sm:$0xff] %vm1036, %v1508
        %v1513 = vld [vmem:[#allocation7] sm:$0xff]
        %1514 = vst.msk [vmem:[%s275] sm:$0xff] %vm1043, %v1513
        %v1515 = vld [vmem:[#allocation7] sm:$0xff]
        %1517 = vrot.lane.b32.xlu0 %v1515, 126
        %v1518 = vpop.permute.xlu0 %1517
        %1520 = vst.msk [vmem:[%s275] sm:$0xff] %vm1056, %v1518
        %v1521 = vld [vmem:[#allocation7] sm:$0xff]
        %1523 = vrot.lane.b32.xlu0 %v1521, 124
        %v1524 = vpop.permute.xlu0 %1523
        %1526 = vst.msk [vmem:[%s275] sm:$0xff] %vm1068, %v1524
        %v1527 = vld [vmem:[#allocation7] sm:$0xff]
        %1529 = vrot.lane.b32.xlu0 %v1527, 122
        %v1530 = vpop.permute.xlu0 %1529
        %1532 = vst.msk [vmem:[%s275] sm:$0xff] %vm1080, %v1530
        %v1533 = vld [vmem:[#allocation7] sm:$0xff]
        %1535 = vrot.lane.b32.xlu0 %v1533, 120
        %v1536 = vpop.permute.xlu0 %1535
        %1538 = vst.msk [vmem:[%s275] sm:$0xff] %vm1092, %v1536
        %v1539 = vld [vmem:[#allocation7] sm:$0xff]
        %1541 = vrot.lane.b32.xlu0 %v1539, 118
        %v1542 = vpop.permute.xlu0 %1541
        %1544 = vst.msk [vmem:[%s275] sm:$0xff] %vm1104, %v1542
        %v1545 = vld [vmem:[#allocation7] sm:$0xff]
        %1547 = vrot.lane.b32.xlu0 %v1545, 116
        %v1548 = vpop.permute.xlu0 %1547
        %1550 = vst.msk [vmem:[%s275] sm:$0xff] %vm1116, %v1548
        %v1551 = vld [vmem:[#allocation7] sm:$0xff]
        %v1552 = vld [vmem:[#allocation7 + $0x8] sm:$0xff]
        %1555 = vrot.lane.b32.xlu0 %v1551, 114
        %v1556 = vpop.permute.xlu0 %1555
        %1557 = vrot.lane.b32.xlu0 %v1552, 114
        %v1558 = vpop.permute.xlu0 %1557
        %v1559 = vsel %vm1133, %v1556, %v1558
        %1561 = vst.msk [vmem:[%s275] sm:$0xff] %vm1136, %v1559
        %v1562 = vld [vmem:[#allocation7 + $0x8] sm:$0xff]
        %1564 = vrot.lane.b32.xlu0 %v1562, 112
        %v1565 = vpop.permute.xlu0 %1564
        %1567 = vst.msk [vmem:[%s275 + $0x8] sm:$0xff] %vm1043, %v1565
        %v1568 = vld [vmem:[#allocation7 + $0x8] sm:$0xff]
        %1570 = vrot.lane.b32.xlu0 %v1568, 110
        %v1571 = vpop.permute.xlu0 %1570
        %1573 = vst.msk [vmem:[%s275 + $0x8] sm:$0xff] %vm1056, %v1571
        %v1574 = vld [vmem:[#allocation7 + $0x8] sm:$0xff]
        %1576 = vrot.lane.b32.xlu0 %v1574, 108
        %v1577 = vpop.permute.xlu0 %1576
        %1579 = vst.msk [vmem:[%s275 + $0x8] sm:$0xff] %vm1068, %v1577
        %v1580 = vld [vmem:[#allocation7 + $0x8] sm:$0xff]
        %1582 = vrot.lane.b32.xlu0 %v1580, 106
        %v1583 = vpop.permute.xlu0 %1582
        %1585 = vst.msk [vmem:[%s275 + $0x8] sm:$0xff] %vm1080, %v1583
        %v1586 = vld [vmem:[#allocation7 + $0x8] sm:$0xff]
        %1588 = vrot.lane.b32.xlu0 %v1586, 104
        %v1589 = vpop.permute.xlu0 %1588
        %1591 = vst.msk [vmem:[%s275 + $0x8] sm:$0xff] %vm1092, %v1589
        %v1592 = vld [vmem:[#allocation7 + $0x8] sm:$0xff]
        %1594 = vrot.lane.b32.xlu0 %v1592, 102
        %v1595 = vpop.permute.xlu0 %1594
        %1597 = vst.msk [vmem:[%s275 + $0x8] sm:$0xff] %vm1104, %v1595
        %v1598 = vld [vmem:[#allocation7 + $0x8] sm:$0xff]
        %v1599 = vld [vmem:[#allocation7 + $0x10] sm:$0xff]
        %1602 = vrot.lane.b32.xlu0 %v1598, 100
        %v1603 = vpop.permute.xlu0 %1602
        %1604 = vrot.lane.b32.xlu0 %v1599, 100
        %v1605 = vpop.permute.xlu0 %1604
        %v1606 = vsel %vm1223, %v1603, %v1605
        %1608 = vst.msk [vmem:[%s275 + $0x8] sm:$0xff] %vm1116, %v1606
        %v1609 = vld [vmem:[#allocation7 + $0x10] sm:$0xff]
        %1611 = vrot.lane.b32.xlu0 %v1609, 98
        %v1612 = vpop.permute.xlu0 %1611
        %1614 = vst.msk [vmem:[%s275 + $0x8] sm:$0xff] %vm1136, %v1612
        %s1615 = sand.u32 %s145, 1
        %s1616 = scalar_lea.sflag [#allocation10], %s1615
        %s1617 = sand.u32 %s145, 1
        %s1618 = smul.addr %s1617, 16
        %s1619 = scalar_lea.vmem [#allocation11], %s1618
        %s1620 = sand.u32 %s171, 1
        %s1621 = scalar_lea.sflag [#allocation13], %s1620
        %s1622 = sand.u32 %s171, 1
        %s1623 = smul.addr %s1622, 16
        %s1624 = scalar_lea.vmem [#allocation12], %s1623
        // Predicated region
        $region45: #{tpu_custom_call.1} parent=39 // pred_check
          %p1625 = pneg %p155
        $region46: #{tpu_custom_call.1} parent=39 // pred_check_branch
          %1627 = sbr.rel (%p1625) target = $region48
        $region47: #{tpu_custom_call.1} parent=39 // pred_region
          %1629 = vsyncadd %s1616, 0
          %s1630 = smul.addr %s27, 2
          %s1631 = smul.addr %s1630, 8
          %s1632 = scalar_lea.hbm %s5, %s1631
          %s1634 = sshll.u32 %s1619, 4
          %s1635 = int_to_ptr.vmem [resolvable:$true] %s1634
          %s1636 = sshll.u32 %s1632, 4
          %s1637 = int_to_ptr.hbm [resolvable:$true] %s1636
          %1639 = dma.vmem_to_hbm [thread:$0]  %s1635, 256, %s1637, %s1616
        $region48: #{tpu_custom_call.1} parent=39 // pred_fallthru
          _
        // Predicated region
        $region49: #{tpu_custom_call.1} parent=39 // pred_check
          %p1640 = pneg %p181
        $region50: #{tpu_custom_call.1} parent=39 // pred_check_branch
          %1642 = sbr.rel (%p1640) target = $region52
        $region51: #{tpu_custom_call.1} parent=39 // pred_region
          %1644 = vsyncadd %s1621, 0
          %s1645 = smul.addr %s27, 2
          %s1646 = smul.addr %s1645, 8
          %s1647 = scalar_lea.hbm %s6, %s1646
          %s1649 = sshll.u32 %s1624, 4
          %s1650 = int_to_ptr.vmem [resolvable:$true] %s1649
          %s1651 = sshll.u32 %s1647, 4
          %s1652 = int_to_ptr.hbm [resolvable:$true] %s1651
          %1654 = dma.vmem_to_hbm [thread:$0]  %s1650, 256, %s1652, %s1621
        $region52: #{tpu_custom_call.1} parent=39 // pred_fallthru
          _
      $region40: #{tpu_custom_call.1} parent=5 // pred_fallthru
        _
      %p1655 = scmp.le.s32.totalorder 2, %s22
      // Predicated region
      $region53: #{tpu_custom_call.1} parent=5 // pred_check
        %p1656 = pneg %p1655
      $region54: #{tpu_custom_call.1} parent=5 // pred_check_branch
        %1658 = sbr.rel (%p1656) target = $region56
      $region55: #{tpu_custom_call.1} parent=5 // pred_region
        %s1659 = ssub.s32 %s22, 2
        // Predicated region
        $region57: #{tpu_custom_call.1} parent=55 // pred_check
          %p1660 = pneg %p161
        $region58: #{tpu_custom_call.1} parent=55 // pred_check_branch
          %1662 = sbr.rel (%p1660) target = $region60
        $region59: #{tpu_custom_call.1} parent=55 // pred_region
          %s1663 = sand.u32 %s146, 1
          %s1664 = scalar_lea.sflag [#allocation10], %s1663
          %s1665 = sand.u32 %s146, 1
          %s1666 = smul.addr %s1665, 16
          %s1667 = scalar_lea.vmem [#allocation11], %s1666
          %1669 = dma.done %s1664, 256
        $region60: #{tpu_custom_call.1} parent=55 // pred_fallthru
          _
        // Predicated region
        $region61: #{tpu_custom_call.1} parent=55 // pred_check
          %p1670 = pneg %p187
        $region62: #{tpu_custom_call.1} parent=55 // pred_check_branch
          %1672 = sbr.rel (%p1670) target = $region64
        $region63: #{tpu_custom_call.1} parent=55 // pred_region
          %s1673 = sand.u32 %s172, 1
          %s1674 = scalar_lea.sflag [#allocation13], %s1673
          %s1675 = sand.u32 %s172, 1
          %s1676 = smul.addr %s1675, 16
          %s1677 = scalar_lea.vmem [#allocation12], %s1676
          %1679 = dma.done %s1674, 256
        $region64: #{tpu_custom_call.1} parent=55 // pred_fallthru
          _
      $region56: #{tpu_custom_call.1} parent=5 // pred_fallthru
        _
    $region6: #{tpu_custom_call.1} parent=1 // loop_footer
      %s26 = sadd.s32 1, %s22
    $region7: #{tpu_custom_call.1} parent=1 // loop_footer_branch
      %21 = sbr.rel target = $region3
    $region8: #{tpu_custom_call.1} parent=1 // loop_exit
      _
    %1680 = vsyncpa [#allocation9], 1
    %s1681 = scalar_lea.sflag [#allocation9], 1
    %1682 = vsyncpa %s1681, 1
    %1683 = vsyncpa [#allocation10], 1
    %s1684 = scalar_lea.sflag [#allocation10], 1
    %1685 = vsyncpa %s1684, 1
    %1686 = vsyncpa [#allocation13], 1
    %s1687 = scalar_lea.sflag [#allocation13], 1
    %1688 = vsyncpa %s1687, 1

</llo_original>
